<compile_context>
chip_gen: v5e
topology: v5e:2x2
jax: 0.10.0
libtpu: 0.0.40
codegen_flags: <defaults>
</compile_context>

<pallas_src>
from math import sqrt

import jax
import jax.numpy as jnp
from jax.experimental import pallas as pl
from jax.experimental.pallas import tpu as pltpu


# ----------------------------------------------------------------------------
# Kernel bodies
# ----------------------------------------------------------------------------
def _select_best(w_ref, s_ref):
    """Running argmax over the slot axis K (leading axis of the block).

    Strict '>' preserves torch.argmax first-occurrence tie behaviour.
    Scores are compared in f32 (exact upcast from bf16; free under the ~10x
    compute slack and valid on v5e's VPU, which has no bf16 ALU).
    """
    k_slots = s_ref.shape[0]
    best_s = s_ref[0].astype(jnp.float32)      # (TN, TI)
    best_w = w_ref[0]                          # (TN, TI), storage dtype
    for kk in range(1, k_slots):
        sk = s_ref[kk].astype(jnp.float32)
        better = sk > best_s
        best_s = jnp.where(better, sk, best_s)
        best_w = jnp.where(better, w_ref[kk], best_w)
    # TODO(synk): NaN scores diverge from torch.argmax (a NaN slot never wins
    # unless it is slot 0); acceptable edge case for the forward pass.
    return best_w


def _collapse_kernel(w_ref, s_ref, net_ref):
    """Pass 1: collapse (weight, score) slots -> net tile.  Pure elementwise."""
    net_ref[...] = _select_best(w_ref, s_ref).astype(net_ref.dtype)


def _matmul_bias_kernel(x_ref, n_ref, b_ref, o_ref, acc_ref):
    """Pass 2: out = x @ net.T + bias, reduction axis (I) last in the grid."""
    i = pl.program_id(2)

    @pl.when(i == 0)
    def _():
        acc_ref[...] = jnp.zeros_like(acc_ref)

    # Contract x (TM, TI) with net (TN, TI) over TI — no in-kernel transpose.
    acc_ref[...] += jax.lax.dot_general(
        x_ref[...].astype(n_ref.dtype), n_ref[...],
        dimension_numbers=(((1,), (1,)), ((), ())),
        preferred_element_type=jnp.float32)

    @pl.when(i == pl.num_programs(2) - 1)
    def _():
        o_ref[...] = (acc_ref[...] + b_ref[...]).astype(o_ref.dtype)


def _fused_kernel(x_ref, w_ref, s_ref, b_ref, o_ref, acc_ref):
    """Fused selection + matmul for the small-M (single M tile) regime."""
    i = pl.program_id(1)

    @pl.when(i == 0)
    def _():
        acc_ref[...] = jnp.zeros_like(acc_ref)

    best_w = _select_best(w_ref, s_ref)                       # (TN, TI)
    acc_ref[...] += jax.lax.dot_general(
        x_ref[...].astype(best_w.dtype), best_w,
        dimension_numbers=(((1,), (1,)), ((), ())),
        preferred_element_type=jnp.float32)

    @pl.when(i == pl.num_programs(1) - 1)
    def _():
        o_ref[...] = (acc_ref[...] + b_ref[...]).astype(o_ref.dtype)


# ----------------------------------------------------------------------------
# Helpers
# ----------------------------------------------------------------------------
def _pick_tile(dim, target, align=128):
    """Largest multiple-of-`align` divisor of `dim` <= target, else `dim`."""
    if dim <= target:
        return dim
    t = (target // align) * align
    while t >= align:
        if dim % t == 0:
            return t
        t -= align
    return dim


def _cap_tn_for_megacore(out_f, tn):
    """Keep the O grid axis at >= 2 steps so 'parallel' actually shards across
    both TensorCores on v7x (no-op on single-TC v5e/v6e)."""
    tn = _pick_tile(out_f, tn)
    if out_f // tn < 2 and out_f >= 2 * 128:
        tn = _pick_tile(out_f, out_f // 2)
    return tn


def _one_hot_argmax_last(score):
    """One-hot of the first maximal element along the last axis."""
    k = score.shape[-1]
    m = jnp.max(score, axis=-1, keepdims=True)
    iota = jax.lax.broadcasted_iota(jnp.int32, score.shape, score.ndim - 1)
    idx = jnp.min(jnp.where(score == m, iota, k), axis=-1, keepdims=True)
    return (iota == idx).astype(score.dtype)


def prepare_params(weight, score, bias, bias_score, *, param_dtype=jnp.bfloat16):
    """One-time (init-time) parameter repack — keep this OUT of the hot path.

    * (O, I, K) -> (K, O, I): lane axis inside the kernel is I (lane-dense),
      no per-call jnp.transpose (that transpose ~doubled HBM traffic before).
    * weight / score stored in `param_dtype` (bf16 by default) — they are the
      dominant HBM stream.
    * bias slot selection is only O*K elements, so collapse it here once.
      NOTE: because bias is (O, 1) broadcast against the (O, K) one-hot, the
      collapse always yields bias[:, 0] regardless of bias_score; this matches
      the torch semantics as written — do not "fix" it into a per-slot bias.
    """
    out_f = weight.shape[0]
    w_koi = jnp.transpose(weight, (2, 0, 1)).astype(param_dtype)   # (K, O, I)
    s_koi = jnp.transpose(score, (2, 0, 1)).astype(param_dtype)    # (K, O, I)
    bsel = _one_hot_argmax_last(bias_score.astype(jnp.float32))    # (O, K)
    bias_c = jnp.sum(bias.astype(jnp.float32) * bsel, axis=-1).reshape(1, out_f)
    return w_koi, s_koi, bias_c


# ----------------------------------------------------------------------------
# pallas_call wrappers
# ----------------------------------------------------------------------------
_VMEM_LIMIT = 48 * 1024 * 1024   # headroom on v7x (64 MiB physical); raise
                                 # over the 16/32 MiB scoped defaults elsewhere.


def collapse_net(w_koi, s_koi, *, tn=256, ti=512, vmem_limit_bytes=_VMEM_LIMIT):
    """Pass 1: collapse slotted (weight, score) -> net (O, I) once in HBM."""
    k, out_f, in_f = w_koi.shape
    tn = _cap_tn_for_megacore(out_f, tn)
    ti = _pick_tile(in_f, ti)
    grid = (out_f // tn, in_f // ti)
    return pl.pallas_call(
        _collapse_kernel,
        out_shape=jax.ShapeDtypeStruct((out_f, in_f), w_koi.dtype),
        grid=grid,
        in_specs=[pl.BlockSpec((k, tn, ti), lambda o, i: (0, o, i)),
                  pl.BlockSpec((k, tn, ti), lambda o, i: (0, o, i))],
        out_specs=pl.BlockSpec((tn, ti), lambda o, i: (o, i)),
        compiler_params=pltpu.CompilerParams(
            dimension_semantics=("parallel", "parallel"),
            vmem_limit_bytes=vmem_limit_bytes),
    )(w_koi, s_koi)


def matmul_bias(x, net, bias_c, *, tm=256, tn=256, ti=512,
                out_dtype=None, vmem_limit_bytes=_VMEM_LIMIT):
    """Pass 2: out = x @ net.T + bias, M/N/K-tiled, reduction axis last."""
    m, in_f = x.shape
    out_f, in_f2 = net.shape
    assert in_f == in_f2
    out_dtype = out_dtype or x.dtype
    tm = _pick_tile(m, tm, align=8)
    tn = _cap_tn_for_megacore(out_f, tn)
    ti = _pick_tile(in_f, ti)
    grid = (m // tm, out_f // tn, in_f // ti)
    return pl.pallas_call(
        _matmul_bias_kernel,
        out_shape=jax.ShapeDtypeStruct((m, out_f), out_dtype),
        grid=grid,
        in_specs=[pl.BlockSpec((tm, ti), lambda mi, o, i: (mi, i)),   # x
                  pl.BlockSpec((tn, ti), lambda mi, o, i: (o, i)),    # net
                  pl.BlockSpec((1, tn), lambda mi, o, i: (0, o))],    # bias
        out_specs=pl.BlockSpec((tm, tn), lambda mi, o, i: (mi, o)),
        scratch_shapes=[pltpu.VMEM((tm, tn), jnp.float32)],
        compiler_params=pltpu.CompilerParams(
            dimension_semantics=("parallel", "parallel", "arbitrary"),
            vmem_limit_bytes=vmem_limit_bytes),
    )(x, net, bias_c)


def slotted_linear_fused(x, w_koi, s_koi, bias_c, *, tn=256, ti=512,
                         out_dtype=None, vmem_limit_bytes=_VMEM_LIMIT):
    """Fused selection + matmul.  Only for small M (single M tile resident)."""
    m, in_f = x.shape
    k, out_f, in_f2 = w_koi.shape
    assert in_f == in_f2
    out_dtype = out_dtype or x.dtype
    tn = _cap_tn_for_megacore(out_f, tn)
    ti = _pick_tile(in_f, ti)
    grid = (out_f // tn, in_f // ti)
    return pl.pallas_call(
        _fused_kernel,
        out_shape=jax.ShapeDtypeStruct((m, out_f), out_dtype),
        grid=grid,
        in_specs=[
            # x is re-fetched once per O tile; accepted knowingly — this path
            # is restricted to small M, large M goes through the two-pass path.
            pl.BlockSpec((m, ti), lambda o, i: (0, i)),
            pl.BlockSpec((k, tn, ti), lambda o, i: (0, o, i)),   # weight (K,O,I)
            pl.BlockSpec((k, tn, ti), lambda o, i: (0, o, i)),   # score  (K,O,I)
            pl.BlockSpec((1, tn), lambda o, i: (0, o)),          # bias   (1,O)
        ],
        out_specs=pl.BlockSpec((m, tn), lambda o, i: (0, o)),
        scratch_shapes=[pltpu.VMEM((m, tn), jnp.float32)],
        compiler_params=pltpu.CompilerParams(
            dimension_semantics=("parallel", "arbitrary"),
            vmem_limit_bytes=vmem_limit_bytes),
    )(x, w_koi, s_koi, bias_c)


def slotted_linear(x, w_koi, s_koi, bias_c, *, two_pass=None,
                   tm=256, tn=256, ti=512, out_dtype=None,
                   vmem_limit_bytes=_VMEM_LIMIT):
    """Forward pass.  `two_pass=None` auto-selects: the fused kernel would
    re-stream + re-select the 2K weight/score slabs for every M tile, so any
    M beyond one tile goes through collapse-then-matmul."""
    m = x.shape[0]
    if two_pass is None:
        two_pass = m > 128
    if two_pass:
        net = collapse_net(w_koi, s_koi, tn=tn, ti=ti,
                           vmem_limit_bytes=vmem_limit_bytes)
        return matmul_bias(x, net, bias_c, tm=tm, tn=tn, ti=ti,
                           out_dtype=out_dtype,
                           vmem_limit_bytes=vmem_limit_bytes)
    return slotted_linear_fused(x, w_koi, s_koi, bias_c, tn=tn, ti=ti,
                                out_dtype=out_dtype,
                                vmem_limit_bytes=vmem_limit_bytes)


# ----------------------------------------------------------------------------
# Init + pure-JAX reference
# ----------------------------------------------------------------------------
def init_params(key, in_features, out_features, k=8, dtype=jnp.float32):
    """Xavier-uniform-style init mirroring Linear._xavier_uniform_ (bias=True)."""
    std = sqrt(6.0 / float(out_features + in_features + 1))
    kw, ks, kb, kbs = jax.random.split(key, 4)
    weight = jax.random.uniform(
        kw, (out_features, in_features, k), dtype, minval=-std, maxval=std)
    score = jax.random.uniform(
        ks, (out_features, in_features, k), dtype, minval=0.0, maxval=std)
    bias = jax.random.uniform(
        kb, (out_features, 1), dtype, minval=-std, maxval=std)
    bias_score = jax.random.uniform(
        kbs, (out_features, k), dtype, minval=0.0, maxval=std)
    return weight, score, bias, bias_score


def reference(x, w_koi, s_koi, bias_c):
    """Pure-JAX reference operating on the same (bf16, (K,O,I)) packed params
    the kernel consumes, mirroring its bf16-operand / f32-accumulate matmul."""
    w_oik = jnp.transpose(w_koi.astype(jnp.float32), (1, 2, 0))   # (O, I, K)
    s_oik = jnp.transpose(s_koi.astype(jnp.float32), (1, 2, 0))
    sel = _one_hot_argmax_last(s_oik)
    net = jnp.sum(w_oik * sel, axis=-1)                           # (O, I)
    xb = x.astype(jnp.bfloat16).astype(jnp.float32)
    nb = net.astype(jnp.bfloat16).astype(jnp.float32)
    return (xb @ nb.T + bias_c).astype(x.dtype)


# ----------------------------------------------------------------------------
# Demo / correctness check
# ----------------------------------------------------------------------------
if __name__ == "__main__":
    in_features, out_features, k = 512, 256, 8

    key = jax.random.PRNGKey(0)
    kx1, kx2, kp = jax.random.split(key, 3)
    weight, score, bias, bias_score = init_params(kp, in_features, out_features, k)

    # One-time repack (outside the hot path): (K,O,I) bf16 + collapsed bias.
    w_koi, s_koi, bias_c = prepare_params(weight, score, bias, bias_score)

    # --- small-M fused path (small tiles so the (2,2) grid + accumulator run)
    x_small = jax.random.normal(kx1, (8, in_features), jnp.float32)
    out_small = slotted_linear(x_small, w_koi, s_koi, bias_c,
                               two_pass=False, tn=128, ti=256)
    out_small = jax.block_until_ready(out_small)
    ref_small = reference(x_small, w_koi, s_koi, bias_c)
    assert out_small.shape == (8, out_features)
    assert jnp.allclose(out_small, ref_small, atol=1e-3, rtol=1e-3), \
        "fused path mismatch vs reference"

    # --- larger-M two-pass path (collapse once, then tiled matmul + bias)
    x_big = jax.random.normal(kx2, (256, in_features), jnp.float32)
    out_big = slotted_linear(x_big, w_koi, s_koi, bias_c,
                             two_pass=True, tm=128, tn=128, ti=256)
    out_big = jax.block_until_ready(out_big)
    ref_big = reference(x_big, w_koi, s_koi, bias_c)
    assert out_big.shape == (256, out_features)
    assert jnp.allclose(out_big, ref_big, atol=1e-3, rtol=1e-3), \
        "two-pass path mismatch vs reference"

    print("KERNEL_OK")
</pallas_src>

<mosaic_0001>
module attributes {stable_mosaic.version = 11 : i64} {
  func.func @_fused_kernel(%arg0: i32, %arg1: i32, %arg2: memref<8x256xf32, #tpu.memory_space<vmem>>, %arg3: memref<8x128x256xbf16, #tpu.memory_space<vmem>>, %arg4: memref<8x128x256xbf16, #tpu.memory_space<vmem>>, %arg5: memref<1x128xf32, #tpu.memory_space<vmem>>, %arg6: memref<8x128xf32, #tpu.memory_space<vmem>>, %arg7: memref<8x128xf32, #tpu.memory_space<vmem>>) attributes {dimension_semantics = [#tpu.dimension_semantics<parallel>, #tpu.dimension_semantics<arbitrary>], iteration_bounds = array<i64: 2, 2>, scalar_prefetch = 0 : i64, scratch_operands = 1 : i64, tpu.core_type = #tpu.core_type<tc>, window_params = [{transform_indices = @transform_0, window_bounds = array<i64: 8, 256>}, {transform_indices = @transform_1, window_bounds = array<i64: 8, 128, 256>}, {transform_indices = @transform_2, window_bounds = array<i64: 8, 128, 256>}, {transform_indices = @transform_3, window_bounds = array<i64: 1, 128>}, {transform_indices = @transform_4, window_bounds = array<i64: 8, 128>}]} {
    %c0_i32 = arith.constant 0 : i32
    %0 = arith.cmpi eq, %arg1, %c0_i32 : i32
    %1 = arith.extui %0 : i1 to i32
    %c0_i32_0 = arith.constant 0 : i32
    %2 = arith.cmpi ne, %1, %c0_i32_0 : i32
    scf.if %2 {
      %cst_48 = arith.constant 0.000000e+00 : f32
      %72 = vector.broadcast %cst_48 : f32 to vector<8x128xf32>
      %c0_49 = arith.constant 0 : index
      %c0_50 = arith.constant 0 : index
      %73 = vector.load %arg7[%c0_49, %c0_50] : memref<8x128xf32, #tpu.memory_space<vmem>>, vector<8x128xf32>
      tpu.vector_store %arg7[%c0_49, %c0_50], %72 {strides = array<i32>} : memref<8x128xf32, #tpu.memory_space<vmem>>, vector<8x128xf32>,
    } else {
    }
    %c0 = arith.constant 0 : index
    %c0_1 = arith.constant 0 : index
    %c0_2 = arith.constant 0 : index
    %3 = vector.load %arg4[%c0, %c0_1, %c0_2] : memref<8x128x256xbf16, #tpu.memory_space<vmem>>, vector<1x128x256xbf16>
    %4 = vector.shape_cast %3 : vector<1x128x256xbf16> to vector<128x256xbf16>
    %5 = arith.extf %4 : vector<128x256xbf16> to vector<128x256xf32>
    %c0_3 = arith.constant 0 : index
    %c0_4 = arith.constant 0 : index
    %c0_5 = arith.constant 0 : index
    %6 = vector.load %arg3[%c0_3, %c0_4, %c0_5] : memref<8x128x256xbf16, #tpu.memory_space<vmem>>, vector<1x128x256xbf16>
    %7 = vector.shape_cast %6 : vector<1x128x256xbf16> to vector<128x256xbf16>
    %c1 = arith.constant 1 : index
    %c0_6 = arith.constant 0 : index
    %c0_7 = arith.constant 0 : index
    %8 = vector.load %arg4[%c1, %c0_6, %c0_7] : memref<8x128x256xbf16, #tpu.memory_space<vmem>>, vector<1x128x256xbf16>
    %9 = vector.shape_cast %8 : vector<1x128x256xbf16> to vector<128x256xbf16>
    %10 = arith.extf %9 : vector<128x256xbf16> to vector<128x256xf32>
    %11 = arith.cmpf ogt, %10, %5 : vector<128x256xf32>
    %12 = arith.select %11, %10, %5 : vector<128x256xi1>, vector<128x256xf32>
    %c1_8 = arith.constant 1 : index
    %c0_9 = arith.constant 0 : index
    %c0_10 = arith.constant 0 : index
    %13 = vector.load %arg3[%c1_8, %c0_9, %c0_10] : memref<8x128x256xbf16, #tpu.memory_space<vmem>>, vector<1x128x256xbf16>
    %14 = vector.shape_cast %13 : vector<1x128x256xbf16> to vector<128x256xbf16>
    %15 = arith.select %11, %14, %7 : vector<128x256xi1>, vector<128x256xbf16>
    %c2 = arith.constant 2 : index
    %c0_11 = arith.constant 0 : index
    %c0_12 = arith.constant 0 : index
    %16 = vector.load %arg4[%c2, %c0_11, %c0_12] : memref<8x128x256xbf16, #tpu.memory_space<vmem>>, vector<1x128x256xbf16>
    %17 = vector.shape_cast %16 : vector<1x128x256xbf16> to vector<128x256xbf16>
    %18 = arith.extf %17 : vector<128x256xbf16> to vector<128x256xf32>
    %19 = arith.cmpf ogt, %18, %12 : vector<128x256xf32>
    %20 = arith.select %19, %18, %12 : vector<128x256xi1>, vector<128x256xf32>
    %c2_13 = arith.constant 2 : index
    %c0_14 = arith.constant 0 : index
    %c0_15 = arith.constant 0 : index
    %21 = vector.load %arg3[%c2_13, %c0_14, %c0_15] : memref<8x128x256xbf16, #tpu.memory_space<vmem>>, vector<1x128x256xbf16>
    %22 = vector.shape_cast %21 : vector<1x128x256xbf16> to vector<128x256xbf16>
    %23 = arith.select %19, %22, %15 : vector<128x256xi1>, vector<128x256xbf16>
    %c3 = arith.constant 3 : index
    %c0_16 = arith.constant 0 : index
    %c0_17 = arith.constant 0 : index
    %24 = vector.load %arg4[%c3, %c0_16, %c0_17] : memref<8x128x256xbf16, #tpu.memory_space<vmem>>, vector<1x128x256xbf16>
    %25 = vector.shape_cast %24 : vector<1x128x256xbf16> to vector<128x256xbf16>
    %26 = arith.extf %25 : vector<128x256xbf16> to vector<128x256xf32>
    %27 = arith.cmpf ogt, %26, %20 : vector<128x256xf32>
    %28 = arith.select %27, %26, %20 : vector<128x256xi1>, vector<128x256xf32>
    %c3_18 = arith.constant 3 : index
    %c0_19 = arith.constant 0 : index
    %c0_20 = arith.constant 0 : index
    %29 = vector.load %arg3[%c3_18, %c0_19, %c0_20] : memref<8x128x256xbf16, #tpu.memory_space<vmem>>, vector<1x128x256xbf16>
    %30 = vector.shape_cast %29 : vector<1x128x256xbf16> to vector<128x256xbf16>
    %31 = arith.select %27, %30, %23 : vector<128x256xi1>, vector<128x256xbf16>
    %c4 = arith.constant 4 : index
    %c0_21 = arith.constant 0 : index
    %c0_22 = arith.constant 0 : index
    %32 = vector.load %arg4[%c4, %c0_21, %c0_22] : memref<8x128x256xbf16, #tpu.memory_space<vmem>>, vector<1x128x256xbf16>
    %33 = vector.shape_cast %32 : vector<1x128x256xbf16> to vector<128x256xbf16>
    %34 = arith.extf %33 : vector<128x256xbf16> to vector<128x256xf32>
    %35 = arith.cmpf ogt, %34, %28 : vector<128x256xf32>
    %36 = arith.select %35, %34, %28 : vector<128x256xi1>, vector<128x256xf32>
    %c4_23 = arith.constant 4 : index
    %c0_24 = arith.constant 0 : index
    %c0_25 = arith.constant 0 : index
    %37 = vector.load %arg3[%c4_23, %c0_24, %c0_25] : memref<8x128x256xbf16, #tpu.memory_space<vmem>>, vector<1x128x256xbf16>
    %38 = vector.shape_cast %37 : vector<1x128x256xbf16> to vector<128x256xbf16>
    %39 = arith.select %35, %38, %31 : vector<128x256xi1>, vector<128x256xbf16>
    %c5 = arith.constant 5 : index
    %c0_26 = arith.constant 0 : index
    %c0_27 = arith.constant 0 : index
    %40 = vector.load %arg4[%c5, %c0_26, %c0_27] : memref<8x128x256xbf16, #tpu.memory_space<vmem>>, vector<1x128x256xbf16>
    %41 = vector.shape_cast %40 : vector<1x128x256xbf16> to vector<128x256xbf16>
    %42 = arith.extf %41 : vector<128x256xbf16> to vector<128x256xf32>
    %43 = arith.cmpf ogt, %42, %36 : vector<128x256xf32>
    %44 = arith.select %43, %42, %36 : vector<128x256xi1>, vector<128x256xf32>
    %c5_28 = arith.constant 5 : index
    %c0_29 = arith.constant 0 : index
    %c0_30 = arith.constant 0 : index
    %45 = vector.load %arg3[%c5_28, %c0_29, %c0_30] : memref<8x128x256xbf16, #tpu.memory_space<vmem>>, vector<1x128x256xbf16>
    %46 = vector.shape_cast %45 : vector<1x128x256xbf16> to vector<128x256xbf16>
    %47 = arith.select %43, %46, %39 : vector<128x256xi1>, vector<128x256xbf16>
    %c6 = arith.constant 6 : index
    %c0_31 = arith.constant 0 : index
    %c0_32 = arith.constant 0 : index
    %48 = vector.load %arg4[%c6, %c0_31, %c0_32] : memref<8x128x256xbf16, #tpu.memory_space<vmem>>, vector<1x128x256xbf16>
    %49 = vector.shape_cast %48 : vector<1x128x256xbf16> to vector<128x256xbf16>
    %50 = arith.extf %49 : vector<128x256xbf16> to vector<128x256xf32>
    %51 = arith.cmpf ogt, %50, %44 : vector<128x256xf32>
    %52 = arith.select %51, %50, %44 : vector<128x256xi1>, vector<128x256xf32>
    %c6_33 = arith.constant 6 : index
    %c0_34 = arith.constant 0 : index
    %c0_35 = arith.constant 0 : index
    %53 = vector.load %arg3[%c6_33, %c0_34, %c0_35] : memref<8x128x256xbf16, #tpu.memory_space<vmem>>, vector<1x128x256xbf16>
    %54 = vector.shape_cast %53 : vector<1x128x256xbf16> to vector<128x256xbf16>
    %55 = arith.select %51, %54, %47 : vector<128x256xi1>, vector<128x256xbf16>
    %c7 = arith.constant 7 : index
    %c0_36 = arith.constant 0 : index
    %c0_37 = arith.constant 0 : index
    %56 = vector.load %arg4[%c7, %c0_36, %c0_37] : memref<8x128x256xbf16, #tpu.memory_space<vmem>>, vector<1x128x256xbf16>
    %57 = vector.shape_cast %56 : vector<1x128x256xbf16> to vector<128x256xbf16>
    %58 = arith.extf %57 : vector<128x256xbf16> to vector<128x256xf32>
    %59 = arith.cmpf ogt, %58, %52 : vector<128x256xf32>
    %c7_38 = arith.constant 7 : index
    %c0_39 = arith.constant 0 : index
    %c0_40 = arith.constant 0 : index
    %60 = vector.load %arg3[%c7_38, %c0_39, %c0_40] : memref<8x128x256xbf16, #tpu.memory_space<vmem>>, vector<1x128x256xbf16>
    %61 = vector.shape_cast %60 : vector<1x128x256xbf16> to vector<128x256xbf16>
    %62 = arith.select %59, %61, %55 : vector<128x256xi1>, vector<128x256xbf16>
    %c0_41 = arith.constant 0 : index
    %c0_42 = arith.constant 0 : index
    %63 = vector.load %arg7[%c0_41, %c0_42] : memref<8x128xf32, #tpu.memory_space<vmem>>, vector<8x128xf32>
    %c0_43 = arith.constant 0 : index
    %c0_44 = arith.constant 0 : index
    %64 = vector.load %arg2[%c0_43, %c0_44] : memref<8x256xf32, #tpu.memory_space<vmem>>, vector<8x256xf32>
    %65 = arith.truncf %64 : vector<8x256xf32> to vector<8x256xbf16>
    %cst = arith.constant dense<0.000000e+00> : vector<8x128xf32>
    %66 = tpu.matmul %65, %62, %cst {dimension_numbers = #tpu.dot_dimension_numbers<[1], [1], [0], [0], [0, 0, 1, 0], [], []>} : vector<8x256xbf16>, vector<128x256xbf16>, vector<8x128xf32> -> vector<8x128xf32>
    %67 = arith.addf %63, %66 : vector<8x128xf32>
    %c0_45 = arith.constant 0 : index
    %c0_46 = arith.constant 0 : index
    %68 = vector.load %arg7[%c0_45, %c0_46] : memref<8x128xf32, #tpu.memory_space<vmem>>, vector<8x128xf32>
    tpu.vector_store %arg7[%c0_45, %c0_46], %67 {strides = array<i32>} : memref<8x128xf32, #tpu.memory_space<vmem>>, vector<8x128xf32>,
    %c1_i32 = arith.constant 1 : i32
    %69 = arith.cmpi eq, %arg1, %c1_i32 : i32
    %70 = arith.extui %69 : i1 to i32
    %c0_i32_47 = arith.constant 0 : i32
    %71 = arith.cmpi ne, %70, %c0_i32_47 : i32
    scf.if %71 {
      %c0_48 = arith.constant 0 : index
      %c0_49 = arith.constant 0 : index
      %72 = vector.load %arg7[%c0_48, %c0_49] : memref<8x128xf32, #tpu.memory_space<vmem>>, vector<8x128xf32>
      %c0_50 = arith.constant 0 : index
      %c0_51 = arith.constant 0 : index
      %73 = vector.load %arg5[%c0_50, %c0_51] : memref<1x128xf32, #tpu.memory_space<vmem>>, vector<1x128xf32>
      %74 = vector.broadcast %73 : vector<1x128xf32> to vector<8x128xf32>
      %75 = arith.addf %72, %74 : vector<8x128xf32>
      %c0_52 = arith.constant 0 : index
      %c0_53 = arith.constant 0 : index
      %76 = vector.load %arg6[%c0_52, %c0_53] : memref<8x128xf32, #tpu.memory_space<vmem>>, vector<8x128xf32>
      tpu.vector_store %arg6[%c0_52, %c0_53], %75 {strides = array<i32>} : memref<8x128xf32, #tpu.memory_space<vmem>>, vector<8x128xf32>,
    } else {
    }
    return
  }
  func.func @transform_0(%arg0: i32, %arg1: i32) -> (i32, i32) {
    %c0_i32 = arith.constant 0 : i32
    %c0_i32_0 = arith.constant 0 : i32
    return %c0_i32, %arg1 : i32, i32
  }
  func.func @transform_1(%arg0: i32, %arg1: i32) -> (i32, i32, i32) {
    %c0_i32 = arith.constant 0 : i32
    %c0_i32_0 = arith.constant 0 : i32
    return %c0_i32, %arg0, %arg1 : i32, i32, i32
  }
  func.func @transform_2(%arg0: i32, %arg1: i32) -> (i32, i32, i32) {
    %c0_i32 = arith.constant 0 : i32
    %c0_i32_0 = arith.constant 0 : i32
    return %c0_i32, %arg0, %arg1 : i32, i32, i32
  }
  func.func @transform_3(%arg0: i32, %arg1: i32) -> (i32, i32) {
    %c0_i32 = arith.constant 0 : i32
    %c0_i32_0 = arith.constant 0 : i32
    return %c0_i32, %arg0 : i32, i32
  }
  func.func @transform_4(%arg0: i32, %arg1: i32) -> (i32, i32) {
    %c0_i32 = arith.constant 0 : i32
    %c0_i32_0 = arith.constant 0 : i32
    return %c0_i32, %arg0 : i32, i32
  }
}

</mosaic_0001>

<llo_original>
// kernel: tpu_custom_call.1
$region0: #{tpu_custom_call.1}
  #allocation0 [shape = 'u32[]', space=smem, size = 0x4, offset = 0x4, fixed_abs, tag = 'smem constant byte address 0x4 - core index']
  #allocation1 [shape = 'u32[72,128]{1,0:T(1,128)}', space=vmem, size = 0x9000, scoped, tag = 'internal scratch']
  #allocation2 [shape = 'f32[8,128]{1,0:T(8,128)}', space=vmem, size = 0x1000, scoped, tag = 'scratch operand']
  #allocation12 [shape = 's32[]', space=sflag, size = 0x4, offset = 0, fixed_abs, tag = 'sflag constant byte address 0x0 - dummy sync flag']
  #allocation14 [shape = 's32[]', space=sflag, size = 0x4, offset = 0, fixed_abs, tag = 'sflag constant byte address 0x0 - dummy sync flag']
  %s0 = inlined_call_operand.hbm [shape: f32[8,512], index: 0, kind: input, shape index: {}]
  %s1 = inlined_call_operand.hbm [shape: bf16[8,256,512], index: 1, kind: input, shape index: {}]
  %s2 = inlined_call_operand.hbm [shape: bf16[8,256,512], index: 2, kind: input, shape index: {}]
  %s3 = inlined_call_operand.hbm [shape: f32[1,256], index: 3, kind: input, shape index: {}]
  %s4 = inlined_call_operand.hbm [shape: f32[8,256], index: 4, kind: output, shape index: {}]
  %s5 = sld [smem:[#allocation0]]
  $region73: #{tpu_custom_call.1} parent=0
    _
  %s7 = ssub.s32 1, %s5
  %s8 = scalar_select 0, %s7, %s5
  $region1: #{tpu_custom_call.1} parent=0
    #allocation3 [shape = 'u8[16384]{0}', space=vmem, size = 0x4000, scoped, tag = 'input window, operand 0']
    #allocation4 [shape = 's32[2]{0}', space=sflag, size = 0x8, scoped, tag = 'scoped memory for tpu_custom_call.1']
    #allocation5 [shape = 's32[2]{0}', space=sflag, size = 0x8, scoped, tag = 'scoped memory for tpu_custom_call.1']
    #allocation6 [shape = 'u8[1048576]{0}', space=vmem, size = 0x100000, scoped, tag = 'input window, operand 1']
    #allocation7 [shape = 's32[2]{0}', space=sflag, size = 0x8, scoped, tag = 'scoped memory for tpu_custom_call.1']
    #allocation8 [shape = 'u8[1048576]{0}', space=vmem, size = 0x100000, scoped, tag = 'input window, operand 2']
    #allocation9 [shape = 'u8[1024]{0}', space=vmem, size = 0x400, scoped, tag = 'input window, operand 3']
    #allocation10 [shape = 's32[2]{0}', space=sflag, size = 0x8, scoped, tag = 'scoped memory for tpu_custom_call.1']
    #allocation11 [shape = 'u8[8192]{0}', space=vmem, size = 0x2000, scoped, tag = 'output window, operand 0']
    %9 = vsyncpa [#allocation4], 0
    %s10 = scalar_lea.sflag [#allocation4], 1
    %11 = vsyncpa %s10, 0
    %12 = vsyncpa [#allocation7], 0
    %s13 = scalar_lea.sflag [#allocation7], 1
    %14 = vsyncpa %s13, 0
    %15 = vsyncpa [#allocation10], 0
    %s16 = scalar_lea.sflag [#allocation10], 1
    %17 = vsyncpa %s16, 0
    %18 = vsyncpa [#allocation5], 0
    %s19 = scalar_lea.sflag [#allocation5], 1
    %20 = vsyncpa %s19, 0
    loop: start=0, step=1, limit=6
    $region2: #{tpu_custom_call.1} parent=1 // loop_pre_header
      _
    $region3: #{tpu_custom_call.1} parent=1 // loop_header
      %s22 = sphi 0, %s26
      %p23 = scmp.ge.s32.totalorder %s22, 6
      %s29 = sphi 0, %s41
      %s30 = sphi 0, %s37
      %s31 = sphi 0, %s29
      %s32 = sphi 0, %s30
      %s33 = sphi 0, %s31
      %s34 = sphi 0, %s32
      %s44 = sphi 0, %s46
      %s47 = sphi 0, %s44
      %s48 = sphi 0, %s47
      %s64 = sphi 0, %s48
      %s72 = sphi 0, %s74
      %s75 = sphi 0, %s72
      %s76 = sphi 0, %s75
      %s92 = sphi 0, %s76
      %s100 = sphi 0, %s102
      %s103 = sphi 0, %s100
      %s104 = sphi 0, %s103
      %s120 = sphi 0, %s104
      %s126 = sphi 0, %s128
      %s129 = sphi 0, %s126
      %s130 = sphi 0, %s129
      %s146 = sphi 0, %s130
      %s152 = sphi 0, %s154
      %s155 = sphi 0, %s152
      %s156 = sphi 0, %s155
      %s172 = sphi 0, %s156
    $region4: #{tpu_custom_call.1} parent=1 // loop_header_branch
      %25 = sbr.rel (%p23) target = $region8
    $region5: #{tpu_custom_call.1} parent=1 // loop_body
      %s27 = ssub.s32 %s22, 1
      %s28 = ssub.s32 %s22, 2
      %s35 = sadd.s32 1, %s30
      %p36 = scmp.ge.s32.totalorder %s35, 2
      %s37 = scalar_select %p36, 0, %s35
      %s38 = sadd.s32 1, %s29
      %s39 = scalar_select %p36, %s38, %s29
      %p40 = scmp.ge.s32.totalorder %s39, 2
      %s41 = scalar_select %p40, 0, %s39
      %s42 = ssub.s32 %s30, %s37
      %p43 = scmp.eq.s32.totalorder %s42, 0
      %s45 = sadd.s32 %s44, 1
      %s46 = scalar_select %p43, %s44, %s45
      %p49 = pneg %p43
      %p50 = scmp.eq.s32.totalorder %s22, 3
      %p51 = por %p49, %p50
      %p52 = scmp.ne.s32.totalorder %s44, %s47
      %p53 = scmp.eq.s32.totalorder %s22, 0
      %p54 = por %p52, %p53
      %p55 = scmp.ne.s32.totalorder %s44, %s47
      %p56 = scmp.eq.s32.totalorder %s27, 3
      %p57 = por %p55, %p56
      %p58 = scmp.ne.s32.totalorder %s47, %s48
      %p59 = scmp.eq.s32.totalorder %s27, 0
      %p60 = por %p58, %p59
      %p61 = scmp.ne.s32.totalorder %s47, %s48
      %p62 = scmp.eq.s32.totalorder %s28, 3
      %p63 = por %p61, %p62
      %p65 = scmp.ne.s32.totalorder %s48, %s64
      %p66 = scmp.eq.s32.totalorder %s28, 0
      %p67 = por %p65, %p66
      %s68 = ssub.s32 %s29, %s41
      %s69 = ssub.s32 %s30, %s37
      %s70 = sor.u32 %s68, %s69
      %p71 = scmp.eq.s32.totalorder %s70, 0
      %s73 = sadd.s32 %s72, 1
      %s74 = scalar_select %p71, %s72, %s73
      %p77 = pneg %p71
      %p78 = scmp.eq.s32.totalorder %s22, 3
      %p79 = por %p77, %p78
      %p80 = scmp.ne.s32.totalorder %s72, %s75
      %p81 = scmp.eq.s32.totalorder %s22, 0
      %p82 = por %p80, %p81
      %p83 = scmp.ne.s32.totalorder %s72, %s75
      %p84 = scmp.eq.s32.totalorder %s27, 3
      %p85 = por %p83, %p84
      %p86 = scmp.ne.s32.totalorder %s75, %s76
      %p87 = scmp.eq.s32.totalorder %s27, 0
      %p88 = por %p86, %p87
      %p89 = scmp.ne.s32.totalorder %s75, %s76
      %p90 = scmp.eq.s32.totalorder %s28, 3
      %p91 = por %p89, %p90
      %p93 = scmp.ne.s32.totalorder %s76, %s92
      %p94 = scmp.eq.s32.totalorder %s28, 0
      %p95 = por %p93, %p94
      %s96 = ssub.s32 %s29, %s41
      %s97 = ssub.s32 %s30, %s37
      %s98 = sor.u32 %s96, %s97
      %p99 = scmp.eq.s32.totalorder %s98, 0
      %s101 = sadd.s32 %s100, 1
      %s102 = scalar_select %p99, %s100, %s101
      %p105 = pneg %p99
      %p106 = scmp.eq.s32.totalorder %s22, 3
      %p107 = por %p105, %p106
      %p108 = scmp.ne.s32.totalorder %s100, %s103
      %p109 = scmp.eq.s32.totalorder %s22, 0
      %p110 = por %p108, %p109
      %p111 = scmp.ne.s32.totalorder %s100, %s103
      %p112 = scmp.eq.s32.totalorder %s27, 3
      %p113 = por %p111, %p112
      %p114 = scmp.ne.s32.totalorder %s103, %s104
      %p115 = scmp.eq.s32.totalorder %s27, 0
      %p116 = por %p114, %p115
      %p117 = scmp.ne.s32.totalorder %s103, %s104
      %p118 = scmp.eq.s32.totalorder %s28, 3
      %p119 = por %p117, %p118
      %p121 = scmp.ne.s32.totalorder %s104, %s120
      %p122 = scmp.eq.s32.totalorder %s28, 0
      %p123 = por %p121, %p122
      %s124 = ssub.s32 %s29, %s41
      %p125 = scmp.eq.s32.totalorder %s124, 0
      %s127 = sadd.s32 %s126, 1
      %s128 = scalar_select %p125, %s126, %s127
      %p131 = pneg %p125
      %p132 = scmp.eq.s32.totalorder %s22, 3
      %p133 = por %p131, %p132
      %p134 = scmp.ne.s32.totalorder %s126, %s129
      %p135 = scmp.eq.s32.totalorder %s22, 0
      %p136 = por %p134, %p135
      %p137 = scmp.ne.s32.totalorder %s126, %s129
      %p138 = scmp.eq.s32.totalorder %s27, 3
      %p139 = por %p137, %p138
      %p140 = scmp.ne.s32.totalorder %s129, %s130
      %p141 = scmp.eq.s32.totalorder %s27, 0
      %p142 = por %p140, %p141
      %p143 = scmp.ne.s32.totalorder %s129, %s130
      %p144 = scmp.eq.s32.totalorder %s28, 3
      %p145 = por %p143, %p144
      %p147 = scmp.ne.s32.totalorder %s130, %s146
      %p148 = scmp.eq.s32.totalorder %s28, 0
      %p149 = por %p147, %p148
      %s150 = ssub.s32 %s29, %s41
      %p151 = scmp.eq.s32.totalorder %s150, 0
      %s153 = sadd.s32 %s152, 1
      %s154 = scalar_select %p151, %s152, %s153
      %p157 = pneg %p151
      %p158 = scmp.eq.s32.totalorder %s22, 3
      %p159 = por %p157, %p158
      %p160 = scmp.ne.s32.totalorder %s152, %s155
      %p161 = scmp.eq.s32.totalorder %s22, 0
      %p162 = por %p160, %p161
      %p163 = scmp.ne.s32.totalorder %s152, %s155
      %p164 = scmp.eq.s32.totalorder %s27, 3
      %p165 = por %p163, %p164
      %p166 = scmp.ne.s32.totalorder %s155, %s156
      %p167 = scmp.eq.s32.totalorder %s27, 0
      %p168 = por %p166, %p167
      %p169 = scmp.ne.s32.totalorder %s155, %s156
      %p170 = scmp.eq.s32.totalorder %s28, 3
      %p171 = por %p169, %p170
      %p173 = scmp.ne.s32.totalorder %s156, %s172
      %p174 = scmp.eq.s32.totalorder %s28, 0
      %p175 = por %p173, %p174
      %p176 = scmp.le.s32.totalorder 1, %s22
      %p177 = scmp.lt.s32.totalorder %s22, 5
      %p178 = pnand %p176, %p177
      %p179 = pneg %p178
      // Predicated region
      $region9: #{tpu_custom_call.1} parent=5 // pred_check
        _
      $region10: #{tpu_custom_call.1} parent=5 // pred_check_branch
        %181 = sbr.rel (%p178) target = $region12
      $region11: #{tpu_custom_call.1} parent=5 // pred_region
        %s182 = ssub.s32 %s22, 1
      $region12: #{tpu_custom_call.1} parent=5 // pred_fallthru
        _
      %p183 = scmp.lt.s32.totalorder %s22, 4
      // Predicated region
      $region13: #{tpu_custom_call.1} parent=5 // pred_check
        %p184 = pneg %p183
      $region14: #{tpu_custom_call.1} parent=5 // pred_check_branch
        %186 = sbr.rel (%p184) target = $region16
      $region15: #{tpu_custom_call.1} parent=5 // pred_region
        // Predicated region
        $region17: #{tpu_custom_call.1} parent=15 // pred_check
          %p187 = pneg %p54
        $region18: #{tpu_custom_call.1} parent=15 // pred_check_branch
          %189 = sbr.rel (%p187) target = $region20
        $region19: #{tpu_custom_call.1} parent=15 // pred_region
          %s190 = sand.u32 %s44, 1
          %s191 = scalar_lea.sflag [#allocation4], %s190
          %s192 = sand.u32 %s44, 1
          %s193 = smul.addr %s192, 16
          %s194 = scalar_lea.vmem [#allocation3], %s193
          %s195 = smul.u32 2, %s30
          %197 = vsyncadd %s191, 0
          %s198 = smul.addr %s195, 8
          %s199 = scalar_lea.hbm %s0, %s198
          %s201 = sshll.u32 %s199, 4
          %s202 = int_to_ptr.hbm [resolvable:$true] %s201
          %s203 = sshll.u32 %s194, 4
          %s204 = int_to_ptr.vmem [resolvable:$true] %s203
          %206 = dma.hbm_to_vmem [thread:$0]  %s202, 256, %s204, %s191
        $region20: #{tpu_custom_call.1} parent=15 // pred_fallthru
          _
        // Predicated region
        $region21: #{tpu_custom_call.1} parent=15 // pred_check
          %p207 = pneg %p82
        $region22: #{tpu_custom_call.1} parent=15 // pred_check_branch
          %209 = sbr.rel (%p207) target = $region24
        $region23: #{tpu_custom_call.1} parent=15 // pred_region
          #allocation13 [shape = 'u32[6]{0}', space=smem, size = 0x18, scoped, tag = 'DMA stride descriptor']
          %s210 = sand.u32 %s22, 1
          %s211 = scalar_lea.sflag [#allocation7], %s210
          %s212 = sand.u32 %s72, 1
          %s213 = smul.addr %s212, 1024
          %s214 = scalar_lea.vmem [#allocation6], %s213
          %s215 = smul.u32 16, %s29
          %s216 = smul.u32 2, %s30
          %218 = vsyncadd %s211, 0
          %s219 = smul.addr %s215, 4
          %s220 = sadd.s32 %s216, %s219
          %s221 = smul.addr %s220, 4
          %s222 = scalar_lea.hbm %s1, %s221
          %s224 = sshll.u32 1, 14
          %s225 = sxor.u32 4294967295, %s224
          %s227 = sld [smem:[#allocation0]]
          %s228 = sadd.s32 2, %s227
          %s230 = sshll.u32 7, 26
          %s231 = sxor.u32 4294967295, %s230
          %s232 = sand.u32 0, %s231
          %s233 = sshll.u32 %s228, 26
          %s234 = sor.u32 %s232, %s233
          %s235 = sshll.u32 %s222, 4
          %s236 = int_to_ptr.hbm [resolvable:$true] %s235
          %s237 = sshll.u32 %s214, 4
          %s238 = int_to_ptr.vmem [resolvable:$true] %s237
          %244 = sst [smem:[#allocation13]] 8192
          %s245 = scalar_lea.smem [#allocation13], 1
          %246 = sst [smem:[%s245]] 2048
          %s247 = scalar_lea.smem [#allocation13], 2
          %248 = sst [smem:[%s247]] 16
          %s249 = scalar_lea.smem [#allocation13], 3
          %250 = sst [smem:[%s249]] 256
          %s251 = scalar_lea.smem [#allocation13], 4
          %252 = sst [smem:[%s251]] 128
          %s253 = scalar_lea.smem [#allocation13], 5
          %254 = sst [smem:[%s253]] 8
          %256 = dma.general %s236, 16384, %s238, %s211, [#allocation12], [#allocation13], %s234, 0
        $region24: #{tpu_custom_call.1} parent=15 // pred_fallthru
          _
        // Predicated region
        $region25: #{tpu_custom_call.1} parent=15 // pred_check
          %p257 = pneg %p110
        $region26: #{tpu_custom_call.1} parent=15 // pred_check_branch
          %259 = sbr.rel (%p257) target = $region28
        $region27: #{tpu_custom_call.1} parent=15 // pred_region
          #allocation15 [shape = 'u32[6]{0}', space=smem, size = 0x18, scoped, tag = 'DMA stride descriptor']
          %s260 = sand.u32 %s22, 1
          %s261 = scalar_lea.sflag [#allocation7], %s260
          %s262 = sand.u32 %s100, 1
          %s263 = smul.addr %s262, 1024
          %s264 = scalar_lea.vmem [#allocation8], %s263
          %s265 = smul.u32 16, %s29
          %s266 = smul.u32 2, %s30
          %268 = vsyncadd %s261, 0
          %s269 = smul.addr %s265, 4
          %s270 = sadd.s32 %s266, %s269
          %s271 = smul.addr %s270, 4
          %s272 = scalar_lea.hbm %s2, %s271
          %s274 = sshll.u32 1, 14
          %s275 = sxor.u32 4294967295, %s274
          %s277 = sld [smem:[#allocation0]]
          %s278 = sadd.s32 2, %s277
          %s280 = sshll.u32 7, 26
          %s281 = sxor.u32 4294967295, %s280
          %s282 = sand.u32 0, %s281
          %s283 = sshll.u32 %s278, 26
          %s284 = sor.u32 %s282, %s283
          %s285 = sshll.u32 %s272, 4
          %s286 = int_to_ptr.hbm [resolvable:$true] %s285
          %s287 = sshll.u32 %s264, 4
          %s288 = int_to_ptr.vmem [resolvable:$true] %s287
          %294 = sst [smem:[#allocation15]] 8192
          %s295 = scalar_lea.smem [#allocation15], 1
          %296 = sst [smem:[%s295]] 2048
          %s297 = scalar_lea.smem [#allocation15], 2
          %298 = sst [smem:[%s297]] 16
          %s299 = scalar_lea.smem [#allocation15], 3
          %300 = sst [smem:[%s299]] 256
          %s301 = scalar_lea.smem [#allocation15], 4
          %302 = sst [smem:[%s301]] 128
          %s303 = scalar_lea.smem [#allocation15], 5
          %304 = sst [smem:[%s303]] 8
          %306 = dma.general %s286, 16384, %s288, %s261, [#allocation14], [#allocation15], %s284, 0
        $region28: #{tpu_custom_call.1} parent=15 // pred_fallthru
          _
        // Predicated region
        $region29: #{tpu_custom_call.1} parent=15 // pred_check
          %p307 = pneg %p136
        $region30: #{tpu_custom_call.1} parent=15 // pred_check_branch
          %309 = sbr.rel (%p307) target = $region32
        $region31: #{tpu_custom_call.1} parent=15 // pred_region
          %s310 = sand.u32 %s126, 1
          %s311 = scalar_lea.sflag [#allocation10], %s310
          %s312 = sand.u32 %s126, 1
          %s313 = scalar_lea.vmem [#allocation9], %s312
          %315 = vsyncadd %s311, 0
          %s316 = scalar_lea.hbm %s3, %s29
          %s318 = sshll.u32 %s316, 4
          %s319 = int_to_ptr.hbm [resolvable:$true] %s318
          %s320 = sshll.u32 %s313, 4
          %s321 = int_to_ptr.vmem [resolvable:$true] %s320
          %323 = dma.hbm_to_vmem [thread:$0]  %s319, 16, %s321, %s311
        $region32: #{tpu_custom_call.1} parent=15 // pred_fallthru
          _
      $region16: #{tpu_custom_call.1} parent=5 // pred_fallthru
        _
      %p324 = scmp.le.s32.totalorder 1, %s22
      %p325 = scmp.lt.s32.totalorder %s22, 5
      %p326 = pnand %p324, %p325
      %p327 = pneg %p326
      // Predicated region
      $region33: #{tpu_custom_call.1} parent=5 // pred_check
        _
      $region34: #{tpu_custom_call.1} parent=5 // pred_check_branch
        %329 = sbr.rel (%p326) target = $region36
      $region35: #{tpu_custom_call.1} parent=5 // pred_region
        %s330 = ssub.s32 %s22, 1
        %s331 = sand.u32 %s47, 1
        %s332 = scalar_lea.sflag [#allocation4], %s331
        %s333 = sand.u32 %s47, 1
        %s334 = smul.addr %s333, 16
        %s335 = scalar_lea.vmem [#allocation3], %s334
        // Predicated region
        $region37: #{tpu_custom_call.1} parent=35 // pred_check
          %p336 = pneg %p60
        $region38: #{tpu_custom_call.1} parent=35 // pred_check_branch
          %338 = sbr.rel (%p336) target = $region40
        $region39: #{tpu_custom_call.1} parent=35 // pred_region
          %340 = dma.done %s332, 256
        $region40: #{tpu_custom_call.1} parent=35 // pred_fallthru
          _
        %s341 = sand.u32 %s27, 1
        %s342 = scalar_lea.sflag [#allocation7], %s341
        %s343 = sand.u32 %s75, 1
        %s344 = smul.addr %s343, 1024
        %s345 = scalar_lea.vmem [#allocation6], %s344
        // Predicated region
        $region41: #{tpu_custom_call.1} parent=35 // pred_check
          %p346 = pneg %p88
        $region42: #{tpu_custom_call.1} parent=35 // pred_check_branch
          %348 = sbr.rel (%p346) target = $region44
        $region43: #{tpu_custom_call.1} parent=35 // pred_region
          %350 = dma.done %s342, 16384
        $region44: #{tpu_custom_call.1} parent=35 // pred_fallthru
          _
        %s351 = sand.u32 %s27, 1
        %s352 = scalar_lea.sflag [#allocation7], %s351
        %s353 = sand.u32 %s103, 1
        %s354 = smul.addr %s353, 1024
        %s355 = scalar_lea.vmem [#allocation8], %s354
        // Predicated region
        $region45: #{tpu_custom_call.1} parent=35 // pred_check
          %p356 = pneg %p116
        $region46: #{tpu_custom_call.1} parent=35 // pred_check_branch
          %358 = sbr.rel (%p356) target = $region48
        $region47: #{tpu_custom_call.1} parent=35 // pred_region
          %360 = dma.done %s352, 16384
        $region48: #{tpu_custom_call.1} parent=35 // pred_fallthru
          _
        %s361 = sand.u32 %s129, 1
        %s362 = scalar_lea.sflag [#allocation10], %s361
        %s363 = sand.u32 %s129, 1
        %s364 = scalar_lea.vmem [#allocation9], %s363
        // Predicated region
        $region49: #{tpu_custom_call.1} parent=35 // pred_check
          %p365 = pneg %p142
        $region50: #{tpu_custom_call.1} parent=35 // pred_check_branch
          %367 = sbr.rel (%p365) target = $region52
        $region51: #{tpu_custom_call.1} parent=35 // pred_region
          %369 = dma.done %s362, 16
        $region52: #{tpu_custom_call.1} parent=35 // pred_fallthru
          _
        %s370 = sand.u32 %s47, 1
        %s371 = scalar_lea.sflag [#allocation4], %s370
        %s372 = sand.u32 %s47, 1
        %s373 = smul.addr %s372, 16
        %s374 = scalar_lea.vmem [#allocation3], %s373
        %p375 = pneg %p60
        %p376 = pneg %p57
        %s377 = sand.u32 %s27, 1
        %s378 = scalar_lea.sflag [#allocation7], %s377
        %s379 = sand.u32 %s75, 1
        %s380 = smul.addr %s379, 1024
        %s381 = scalar_lea.vmem [#allocation6], %s380
        %p382 = pneg %p88
        %p383 = pneg %p85
        %s384 = sand.u32 %s27, 1
        %s385 = scalar_lea.sflag [#allocation7], %s384
        %s386 = sand.u32 %s103, 1
        %s387 = smul.addr %s386, 1024
        %s388 = scalar_lea.vmem [#allocation8], %s387
        %p389 = pneg %p116
        %p390 = pneg %p113
        %s391 = sand.u32 %s129, 1
        %s392 = scalar_lea.sflag [#allocation10], %s391
        %s393 = sand.u32 %s129, 1
        %s394 = scalar_lea.vmem [#allocation9], %s393
        %p395 = pneg %p142
        %p396 = pneg %p139
        %p397 = pneg %p168
        %p398 = pneg %p165
        %s399 = sand.u32 %s155, 1
        %s400 = scalar_lea.sflag [#allocation5], %s399
        %s401 = sand.u32 %s155, 1
        %s402 = smul.addr %s401, 8
        %s403 = scalar_lea.vmem [#allocation11], %s402
        %s404 = smul.u32 2, %s32
        %s405 = smul.u32 16, %s31
        %s406 = smul.u32 2, %s32
        %s407 = smul.u32 16, %s31
        %s408 = smul.u32 2, %s32
        %p409 = scmp.eq.s32.totalorder %s32, 0
        // Predicated region
        $region53: #{tpu_custom_call.1} parent=35 // pred_check
          %p410 = pneg %p409
        $region54: #{tpu_custom_call.1} parent=35 // pred_check_branch
          %412 = sbr.rel (%p410) target = $region56
        $region55: #{tpu_custom_call.1} parent=35 // pred_region
          %413 = vst [vmem:[#allocation2] sm:$0xff] 0.0
        $region56: #{tpu_custom_call.1} parent=35 // pred_fallthru
          _
        %v414 = vld [vmem:[%s355] sm:$0xff]
        %v415 = vld [vmem:[%s355 + $0x8] sm:$0xff]
        %v416 = vld [vmem:[%s355 + $0x10] sm:$0xff]
        %v417 = vld [vmem:[%s355 + $0x18] sm:$0xff]
        %v418 = vld [vmem:[%s355 + $0x20] sm:$0xff]
        %v419 = vld [vmem:[%s355 + $0x28] sm:$0xff]
        %v420 = vld [vmem:[%s355 + $0x30] sm:$0xff]
        %v421 = vld [vmem:[%s355 + $0x38] sm:$0xff]
        %v422 = vld [vmem:[%s355 + $0x40] sm:$0xff]
        %v423 = vld [vmem:[%s355 + $0x48] sm:$0xff]
        %v424 = vld [vmem:[%s355 + $0x50] sm:$0xff]
        %v425 = vld [vmem:[%s355 + $0x58] sm:$0xff]
        %v426 = vld [vmem:[%s355 + $0x60] sm:$0xff]
        %v427 = vld [vmem:[%s355 + $0x68] sm:$0xff]
        %v428 = vld [vmem:[%s355 + $0x70] sm:$0xff]
        %v429 = vld [vmem:[%s355 + $0x78] sm:$0xff]
        %v430 = vunpack.c.l.bf16 %v414
        %v431 = vunpack.c.h.bf16 %v414
        %v432 = vunpack.c.l.bf16 %v415
        %v433 = vunpack.c.h.bf16 %v415
        %v434 = vunpack.c.l.bf16 %v416
        %v435 = vunpack.c.h.bf16 %v416
        %v436 = vunpack.c.l.bf16 %v417
        %v437 = vunpack.c.h.bf16 %v417
        %v438 = vunpack.c.l.bf16 %v418
        %v439 = vunpack.c.h.bf16 %v418
        %v440 = vunpack.c.l.bf16 %v419
        %v441 = vunpack.c.h.bf16 %v419
        %v442 = vunpack.c.l.bf16 %v420
        %v443 = vunpack.c.h.bf16 %v420
        %v444 = vunpack.c.l.bf16 %v421
        %v445 = vunpack.c.h.bf16 %v421
        %v446 = vunpack.c.l.bf16 %v422
        %v447 = vunpack.c.h.bf16 %v422
        %v448 = vunpack.c.l.bf16 %v423
        %v449 = vunpack.c.h.bf16 %v423
        %v450 = vunpack.c.l.bf16 %v424
        %v451 = vunpack.c.h.bf16 %v424
        %v452 = vunpack.c.l.bf16 %v425
        %v453 = vunpack.c.h.bf16 %v425
        %v454 = vunpack.c.l.bf16 %v426
        %v455 = vunpack.c.h.bf16 %v426
        %v456 = vunpack.c.l.bf16 %v427
        %v457 = vunpack.c.h.bf16 %v427
        %v458 = vunpack.c.l.bf16 %v428
        %v459 = vunpack.c.h.bf16 %v428
        %v460 = vunpack.c.l.bf16 %v429
        %v461 = vunpack.c.h.bf16 %v429
        %v462 = vld [vmem:[%s345] sm:$0xff]
        %v463 = vld [vmem:[%s345 + $0x8] sm:$0xff]
        %v464 = vld [vmem:[%s345 + $0x10] sm:$0xff]
        %v465 = vld [vmem:[%s345 + $0x18] sm:$0xff]
        %v466 = vld [vmem:[%s345 + $0x20] sm:$0xff]
        %v467 = vld [vmem:[%s345 + $0x28] sm:$0xff]
        %v468 = vld [vmem:[%s345 + $0x30] sm:$0xff]
        %v469 = vld [vmem:[%s345 + $0x38] sm:$0xff]
        %v470 = vld [vmem:[%s345 + $0x40] sm:$0xff]
        %v471 = vld [vmem:[%s345 + $0x48] sm:$0xff]
        %v472 = vld [vmem:[%s345 + $0x50] sm:$0xff]
        %v473 = vld [vmem:[%s345 + $0x58] sm:$0xff]
        %v474 = vld [vmem:[%s345 + $0x60] sm:$0xff]
        %v475 = vld [vmem:[%s345 + $0x68] sm:$0xff]
        %v476 = vld [vmem:[%s345 + $0x70] sm:$0xff]
        %v477 = vld [vmem:[%s345 + $0x78] sm:$0xff]
        %s478 = scalar_lea.vmem %s355, 128 [#allocation8]
        %v479 = vld [vmem:[%s478] sm:$0xff]
        %v480 = vld [vmem:[%s478 + $0x8] sm:$0xff]
        %v481 = vld [vmem:[%s478 + $0x10] sm:$0xff]
        %v482 = vld [vmem:[%s478 + $0x18] sm:$0xff]
        %v483 = vld [vmem:[%s478 + $0x20] sm:$0xff]
        %v484 = vld [vmem:[%s478 + $0x28] sm:$0xff]
        %v485 = vld [vmem:[%s478 + $0x30] sm:$0xff]
        %v486 = vld [vmem:[%s478 + $0x38] sm:$0xff]
        %v487 = vld [vmem:[%s478 + $0x40] sm:$0xff]
        %v488 = vld [vmem:[%s478 + $0x48] sm:$0xff]
        %v489 = vld [vmem:[%s478 + $0x50] sm:$0xff]
        %v490 = vld [vmem:[%s478 + $0x58] sm:$0xff]
        %v491 = vld [vmem:[%s478 + $0x60] sm:$0xff]
        %v492 = vld [vmem:[%s478 + $0x68] sm:$0xff]
        %v493 = vld [vmem:[%s478 + $0x70] sm:$0xff]
        %v494 = vld [vmem:[%s478 + $0x78] sm:$0xff]
        %v495 = vunpack.c.l.bf16 %v479
        %v496 = vunpack.c.h.bf16 %v479
        %v497 = vunpack.c.l.bf16 %v480
        %v498 = vunpack.c.h.bf16 %v480
        %v499 = vunpack.c.l.bf16 %v481
        %v500 = vunpack.c.h.bf16 %v481
        %v501 = vunpack.c.l.bf16 %v482
        %v502 = vunpack.c.h.bf16 %v482
        %v503 = vunpack.c.l.bf16 %v483
        %v504 = vunpack.c.h.bf16 %v483
        %v505 = vunpack.c.l.bf16 %v484
        %v506 = vunpack.c.h.bf16 %v484
        %v507 = vunpack.c.l.bf16 %v485
        %v508 = vunpack.c.h.bf16 %v485
        %v509 = vunpack.c.l.bf16 %v486
        %v510 = vunpack.c.h.bf16 %v486
        %v511 = vunpack.c.l.bf16 %v487
        %v512 = vunpack.c.h.bf16 %v487
        %v513 = vunpack.c.l.bf16 %v488
        %v514 = vunpack.c.h.bf16 %v488
        %v515 = vunpack.c.l.bf16 %v489
        %v516 = vunpack.c.h.bf16 %v489
        %v517 = vunpack.c.l.bf16 %v490
        %v518 = vunpack.c.h.bf16 %v490
        %v519 = vunpack.c.l.bf16 %v491
        %v520 = vunpack.c.h.bf16 %v491
        %v521 = vunpack.c.l.bf16 %v492
        %v522 = vunpack.c.h.bf16 %v492
        %v523 = vunpack.c.l.bf16 %v493
        %v524 = vunpack.c.h.bf16 %v493
        %v525 = vunpack.c.l.bf16 %v494
        %v526 = vunpack.c.h.bf16 %v494
        %vm527 = vcmp.gt.f32.partialorder %v495, %v430
        %vm528 = vcmp.gt.f32.partialorder %v496, %v431
        %vm529 = vcmp.gt.f32.partialorder %v497, %v432
        %vm530 = vcmp.gt.f32.partialorder %v498, %v433
        %vm531 = vcmp.gt.f32.partialorder %v499, %v434
        %vm532 = vcmp.gt.f32.partialorder %v500, %v435
        %vm533 = vcmp.gt.f32.partialorder %v501, %v436
        %vm534 = vcmp.gt.f32.partialorder %v502, %v437
        %vm535 = vcmp.gt.f32.partialorder %v503, %v438
        %vm536 = vcmp.gt.f32.partialorder %v504, %v439
        %vm537 = vcmp.gt.f32.partialorder %v505, %v440
        %vm538 = vcmp.gt.f32.partialorder %v506, %v441
        %vm539 = vcmp.gt.f32.partialorder %v507, %v442
        %vm540 = vcmp.gt.f32.partialorder %v508, %v443
        %vm541 = vcmp.gt.f32.partialorder %v509, %v444
        %vm542 = vcmp.gt.f32.partialorder %v510, %v445
        %vm543 = vcmp.gt.f32.partialorder %v511, %v446
        %vm544 = vcmp.gt.f32.partialorder %v512, %v447
        %vm545 = vcmp.gt.f32.partialorder %v513, %v448
        %vm546 = vcmp.gt.f32.partialorder %v514, %v449
        %vm547 = vcmp.gt.f32.partialorder %v515, %v450
        %vm548 = vcmp.gt.f32.partialorder %v516, %v451
        %vm549 = vcmp.gt.f32.partialorder %v517, %v452
        %vm550 = vcmp.gt.f32.partialorder %v518, %v453
        %vm551 = vcmp.gt.f32.partialorder %v519, %v454
        %vm552 = vcmp.gt.f32.partialorder %v520, %v455
        %vm553 = vcmp.gt.f32.partialorder %v521, %v456
        %vm554 = vcmp.gt.f32.partialorder %v522, %v457
        %vm555 = vcmp.gt.f32.partialorder %v523, %v458
        %vm556 = vcmp.gt.f32.partialorder %v524, %v459
        %vm557 = vcmp.gt.f32.partialorder %v525, %v460
        %vm558 = vcmp.gt.f32.partialorder %v526, %v461
        %v559 = vsel %vm527, %v495, %v430
        %v560 = vsel %vm528, %v496, %v431
        %v561 = vsel %vm529, %v497, %v432
        %v562 = vsel %vm530, %v498, %v433
        %v563 = vsel %vm531, %v499, %v434
        %v564 = vsel %vm532, %v500, %v435
        %v565 = vsel %vm533, %v501, %v436
        %v566 = vsel %vm534, %v502, %v437
        %v567 = vsel %vm535, %v503, %v438
        %v568 = vsel %vm536, %v504, %v439
        %v569 = vsel %vm537, %v505, %v440
        %v570 = vsel %vm538, %v506, %v441
        %v571 = vsel %vm539, %v507, %v442
        %v572 = vsel %vm540, %v508, %v443
        %v573 = vsel %vm541, %v509, %v444
        %v574 = vsel %vm542, %v510, %v445
        %v575 = vsel %vm543, %v511, %v446
        %v576 = vsel %vm544, %v512, %v447
        %v577 = vsel %vm545, %v513, %v448
        %v578 = vsel %vm546, %v514, %v449
        %v579 = vsel %vm547, %v515, %v450
        %v580 = vsel %vm548, %v516, %v451
        %v581 = vsel %vm549, %v517, %v452
        %v582 = vsel %vm550, %v518, %v453
        %v583 = vsel %vm551, %v519, %v454
        %v584 = vsel %vm552, %v520, %v455
        %v585 = vsel %vm553, %v521, %v456
        %v586 = vsel %vm554, %v522, %v457
        %v587 = vsel %vm555, %v523, %v458
        %v588 = vsel %vm556, %v524, %v459
        %v589 = vsel %vm557, %v525, %v460
        %v590 = vsel %vm558, %v526, %v461
        %s591 = scalar_lea.vmem %s345, 128 [#allocation6]
        %v592 = vld [vmem:[%s591] sm:$0xff]
        %v593 = vld [vmem:[%s591 + $0x8] sm:$0xff]
        %v594 = vld [vmem:[%s591 + $0x10] sm:$0xff]
        %v595 = vld [vmem:[%s591 + $0x18] sm:$0xff]
        %v596 = vld [vmem:[%s591 + $0x20] sm:$0xff]
        %v597 = vld [vmem:[%s591 + $0x28] sm:$0xff]
        %v598 = vld [vmem:[%s591 + $0x30] sm:$0xff]
        %v599 = vld [vmem:[%s591 + $0x38] sm:$0xff]
        %v600 = vld [vmem:[%s591 + $0x40] sm:$0xff]
        %v601 = vld [vmem:[%s591 + $0x48] sm:$0xff]
        %v602 = vld [vmem:[%s591 + $0x50] sm:$0xff]
        %v603 = vld [vmem:[%s591 + $0x58] sm:$0xff]
        %v604 = vld [vmem:[%s591 + $0x60] sm:$0xff]
        %v605 = vld [vmem:[%s591 + $0x68] sm:$0xff]
        %v606 = vld [vmem:[%s591 + $0x70] sm:$0xff]
        %v607 = vld [vmem:[%s591 + $0x78] sm:$0xff]
        %vm608 = vmpackc.low %vm528, %vm527
        %vm609 = vmpackc.low %vm530, %vm529
        %vm610 = vmpackc.low %vm532, %vm531
        %vm611 = vmpackc.low %vm534, %vm533
        %vm612 = vmpackc.low %vm536, %vm535
        %vm613 = vmpackc.low %vm538, %vm537
        %vm614 = vmpackc.low %vm540, %vm539
        %vm615 = vmpackc.low %vm542, %vm541
        %vm616 = vmpackc.low %vm544, %vm543
        %vm617 = vmpackc.low %vm546, %vm545
        %vm618 = vmpackc.low %vm548, %vm547
        %vm619 = vmpackc.low %vm550, %vm549
        %vm620 = vmpackc.low %vm552, %vm551
        %vm621 = vmpackc.low %vm554, %vm553
        %vm622 = vmpackc.low %vm556, %vm555
        %vm623 = vmpackc.low %vm558, %vm557
        %v624 = vsel %vm608, %v592, %v462
        %v625 = vsel %vm609, %v593, %v463
        %v626 = vsel %vm610, %v594, %v464
        %v627 = vsel %vm611, %v595, %v465
        %v628 = vsel %vm612, %v596, %v466
        %v629 = vsel %vm613, %v597, %v467
        %v630 = vsel %vm614, %v598, %v468
        %v631 = vsel %vm615, %v599, %v469
        %v632 = vsel %vm616, %v600, %v470
        %v633 = vsel %vm617, %v601, %v471
        %v634 = vsel %vm618, %v602, %v472
        %v635 = vsel %vm619, %v603, %v473
        %v636 = vsel %vm620, %v604, %v474
        %v637 = vsel %vm621, %v605, %v475
        %v638 = vsel %vm622, %v606, %v476
        %v639 = vsel %vm623, %v607, %v477
        %s640 = scalar_lea.vmem %s355, 256 [#allocation8]
        %v641 = vld [vmem:[%s640] sm:$0xff]
        %v642 = vld [vmem:[%s640 + $0x8] sm:$0xff]
        %v643 = vld [vmem:[%s640 + $0x10] sm:$0xff]
        %v644 = vld [vmem:[%s640 + $0x18] sm:$0xff]
        %v645 = vld [vmem:[%s640 + $0x20] sm:$0xff]
        %v646 = vld [vmem:[%s640 + $0x28] sm:$0xff]
        %v647 = vld [vmem:[%s640 + $0x30] sm:$0xff]
        %v648 = vld [vmem:[%s640 + $0x38] sm:$0xff]
        %v649 = vld [vmem:[%s640 + $0x40] sm:$0xff]
        %v650 = vld [vmem:[%s640 + $0x48] sm:$0xff]
        %v651 = vld [vmem:[%s640 + $0x50] sm:$0xff]
        %v652 = vld [vmem:[%s640 + $0x58] sm:$0xff]
        %v653 = vld [vmem:[%s640 + $0x60] sm:$0xff]
        %v654 = vld [vmem:[%s640 + $0x68] sm:$0xff]
        %v655 = vld [vmem:[%s640 + $0x70] sm:$0xff]
        %v656 = vld [vmem:[%s640 + $0x78] sm:$0xff]
        %v657 = vunpack.c.l.bf16 %v641
        %v658 = vunpack.c.h.bf16 %v641
        %v659 = vunpack.c.l.bf16 %v642
        %v660 = vunpack.c.h.bf16 %v642
        %v661 = vunpack.c.l.bf16 %v643
        %v662 = vunpack.c.h.bf16 %v643
        %v663 = vunpack.c.l.bf16 %v644
        %v664 = vunpack.c.h.bf16 %v644
        %v665 = vunpack.c.l.bf16 %v645
        %v666 = vunpack.c.h.bf16 %v645
        %v667 = vunpack.c.l.bf16 %v646
        %v668 = vunpack.c.h.bf16 %v646
        %v669 = vunpack.c.l.bf16 %v647
        %v670 = vunpack.c.h.bf16 %v647
        %v671 = vunpack.c.l.bf16 %v648
        %v672 = vunpack.c.h.bf16 %v648
        %v673 = vunpack.c.l.bf16 %v649
        %v674 = vunpack.c.h.bf16 %v649
        %v675 = vunpack.c.l.bf16 %v650
        %v676 = vunpack.c.h.bf16 %v650
        %v677 = vunpack.c.l.bf16 %v651
        %v678 = vunpack.c.h.bf16 %v651
        %v679 = vunpack.c.l.bf16 %v652
        %v680 = vunpack.c.h.bf16 %v652
        %v681 = vunpack.c.l.bf16 %v653
        %v682 = vunpack.c.h.bf16 %v653
        %v683 = vunpack.c.l.bf16 %v654
        %v684 = vunpack.c.h.bf16 %v654
        %v685 = vunpack.c.l.bf16 %v655
        %v686 = vunpack.c.h.bf16 %v655
        %v687 = vunpack.c.l.bf16 %v656
        %v688 = vunpack.c.h.bf16 %v656
        %vm689 = vcmp.gt.f32.partialorder %v657, %v559
        %vm690 = vcmp.gt.f32.partialorder %v658, %v560
        %vm691 = vcmp.gt.f32.partialorder %v659, %v561
        %vm692 = vcmp.gt.f32.partialorder %v660, %v562
        %vm693 = vcmp.gt.f32.partialorder %v661, %v563
        %vm694 = vcmp.gt.f32.partialorder %v662, %v564
        %vm695 = vcmp.gt.f32.partialorder %v663, %v565
        %vm696 = vcmp.gt.f32.partialorder %v664, %v566
        %vm697 = vcmp.gt.f32.partialorder %v665, %v567
        %vm698 = vcmp.gt.f32.partialorder %v666, %v568
        %vm699 = vcmp.gt.f32.partialorder %v667, %v569
        %vm700 = vcmp.gt.f32.partialorder %v668, %v570
        %vm701 = vcmp.gt.f32.partialorder %v669, %v571
        %vm702 = vcmp.gt.f32.partialorder %v670, %v572
        %vm703 = vcmp.gt.f32.partialorder %v671, %v573
        %vm704 = vcmp.gt.f32.partialorder %v672, %v574
        %vm705 = vcmp.gt.f32.partialorder %v673, %v575
        %vm706 = vcmp.gt.f32.partialorder %v674, %v576
        %vm707 = vcmp.gt.f32.partialorder %v675, %v577
        %vm708 = vcmp.gt.f32.partialorder %v676, %v578
        %vm709 = vcmp.gt.f32.partialorder %v677, %v579
        %vm710 = vcmp.gt.f32.partialorder %v678, %v580
        %vm711 = vcmp.gt.f32.partialorder %v679, %v581
        %vm712 = vcmp.gt.f32.partialorder %v680, %v582
        %vm713 = vcmp.gt.f32.partialorder %v681, %v583
        %vm714 = vcmp.gt.f32.partialorder %v682, %v584
        %vm715 = vcmp.gt.f32.partialorder %v683, %v585
        %vm716 = vcmp.gt.f32.partialorder %v684, %v586
        %vm717 = vcmp.gt.f32.partialorder %v685, %v587
        %vm718 = vcmp.gt.f32.partialorder %v686, %v588
        %vm719 = vcmp.gt.f32.partialorder %v687, %v589
        %vm720 = vcmp.gt.f32.partialorder %v688, %v590
        %v721 = vsel %vm689, %v657, %v559
        %v722 = vsel %vm690, %v658, %v560
        %v723 = vsel %vm691, %v659, %v561
        %v724 = vsel %vm692, %v660, %v562
        %v725 = vsel %vm693, %v661, %v563
        %v726 = vsel %vm694, %v662, %v564
        %v727 = vsel %vm695, %v663, %v565
        %v728 = vsel %vm696, %v664, %v566
        %v729 = vsel %vm697, %v665, %v567
        %v730 = vsel %vm698, %v666, %v568
        %v731 = vsel %vm699, %v667, %v569
        %v732 = vsel %vm700, %v668, %v570
        %v733 = vsel %vm701, %v669, %v571
        %v734 = vsel %vm702, %v670, %v572
        %v735 = vsel %vm703, %v671, %v573
        %v736 = vsel %vm704, %v672, %v574
        %v737 = vsel %vm705, %v673, %v575
        %v738 = vsel %vm706, %v674, %v576
        %v739 = vsel %vm707, %v675, %v577
        %v740 = vsel %vm708, %v676, %v578
        %v741 = vsel %vm709, %v677, %v579
        %v742 = vsel %vm710, %v678, %v580
        %v743 = vsel %vm711, %v679, %v581
        %v744 = vsel %vm712, %v680, %v582
        %v745 = vsel %vm713, %v681, %v583
        %v746 = vsel %vm714, %v682, %v584
        %v747 = vsel %vm715, %v683, %v585
        %v748 = vsel %vm716, %v684, %v586
        %v749 = vsel %vm717, %v685, %v587
        %v750 = vsel %vm718, %v686, %v588
        %v751 = vsel %vm719, %v687, %v589
        %v752 = vsel %vm720, %v688, %v590
        %s753 = scalar_lea.vmem %s345, 256 [#allocation6]
        %v754 = vld [vmem:[%s753] sm:$0xff]
        %v755 = vld [vmem:[%s753 + $0x8] sm:$0xff]
        %v756 = vld [vmem:[%s753 + $0x10] sm:$0xff]
        %v757 = vld [vmem:[%s753 + $0x18] sm:$0xff]
        %v758 = vld [vmem:[%s753 + $0x20] sm:$0xff]
        %v759 = vld [vmem:[%s753 + $0x28] sm:$0xff]
        %v760 = vld [vmem:[%s753 + $0x30] sm:$0xff]
        %v761 = vld [vmem:[%s753 + $0x38] sm:$0xff]
        %v762 = vld [vmem:[%s753 + $0x40] sm:$0xff]
        %v763 = vld [vmem:[%s753 + $0x48] sm:$0xff]
        %v764 = vld [vmem:[%s753 + $0x50] sm:$0xff]
        %v765 = vld [vmem:[%s753 + $0x58] sm:$0xff]
        %v766 = vld [vmem:[%s753 + $0x60] sm:$0xff]
        %v767 = vld [vmem:[%s753 + $0x68] sm:$0xff]
        %v768 = vld [vmem:[%s753 + $0x70] sm:$0xff]
        %v769 = vld [vmem:[%s753 + $0x78] sm:$0xff]
        %vm770 = vmpackc.low %vm690, %vm689
        %vm771 = vmpackc.low %vm692, %vm691
        %vm772 = vmpackc.low %vm694, %vm693
        %vm773 = vmpackc.low %vm696, %vm695
        %vm774 = vmpackc.low %vm698, %vm697
        %vm775 = vmpackc.low %vm700, %vm699
        %vm776 = vmpackc.low %vm702, %vm701
        %vm777 = vmpackc.low %vm704, %vm703
        %vm778 = vmpackc.low %vm706, %vm705
        %vm779 = vmpackc.low %vm708, %vm707
        %vm780 = vmpackc.low %vm710, %vm709
        %vm781 = vmpackc.low %vm712, %vm711
        %vm782 = vmpackc.low %vm714, %vm713
        %vm783 = vmpackc.low %vm716, %vm715
        %vm784 = vmpackc.low %vm718, %vm717
        %vm785 = vmpackc.low %vm720, %vm719
        %v786 = vsel %vm770, %v754, %v624
        %v787 = vsel %vm771, %v755, %v625
        %v788 = vsel %vm772, %v756, %v626
        %v789 = vsel %vm773, %v757, %v627
        %v790 = vsel %vm774, %v758, %v628
        %v791 = vsel %vm775, %v759, %v629
        %v792 = vsel %vm776, %v760, %v630
        %v793 = vsel %vm777, %v761, %v631
        %v794 = vsel %vm778, %v762, %v632
        %v795 = vsel %vm779, %v763, %v633
        %v796 = vsel %vm780, %v764, %v634
        %v797 = vsel %vm781, %v765, %v635
        %v798 = vsel %vm782, %v766, %v636
        %v799 = vsel %vm783, %v767, %v637
        %v800 = vsel %vm784, %v768, %v638
        %v801 = vsel %vm785, %v769, %v639
        %s802 = scalar_lea.vmem %s355, 384 [#allocation8]
        %v803 = vld [vmem:[%s802] sm:$0xff]
        %v804 = vld [vmem:[%s802 + $0x8] sm:$0xff]
        %v805 = vld [vmem:[%s802 + $0x10] sm:$0xff]
        %v806 = vld [vmem:[%s802 + $0x18] sm:$0xff]
        %v807 = vld [vmem:[%s802 + $0x20] sm:$0xff]
        %v808 = vld [vmem:[%s802 + $0x28] sm:$0xff]
        %v809 = vld [vmem:[%s802 + $0x30] sm:$0xff]
        %v810 = vld [vmem:[%s802 + $0x38] sm:$0xff]
        %v811 = vld [vmem:[%s802 + $0x40] sm:$0xff]
        %v812 = vld [vmem:[%s802 + $0x48] sm:$0xff]
        %v813 = vld [vmem:[%s802 + $0x50] sm:$0xff]
        %v814 = vld [vmem:[%s802 + $0x58] sm:$0xff]
        %v815 = vld [vmem:[%s802 + $0x60] sm:$0xff]
        %v816 = vld [vmem:[%s802 + $0x68] sm:$0xff]
        %v817 = vld [vmem:[%s802 + $0x70] sm:$0xff]
        %v818 = vld [vmem:[%s802 + $0x78] sm:$0xff]
        %v819 = vunpack.c.l.bf16 %v803
        %v820 = vunpack.c.h.bf16 %v803
        %v821 = vunpack.c.l.bf16 %v804
        %v822 = vunpack.c.h.bf16 %v804
        %v823 = vunpack.c.l.bf16 %v805
        %v824 = vunpack.c.h.bf16 %v805
        %v825 = vunpack.c.l.bf16 %v806
        %v826 = vunpack.c.h.bf16 %v806
        %v827 = vunpack.c.l.bf16 %v807
        %v828 = vunpack.c.h.bf16 %v807
        %v829 = vunpack.c.l.bf16 %v808
        %v830 = vunpack.c.h.bf16 %v808
        %v831 = vunpack.c.l.bf16 %v809
        %v832 = vunpack.c.h.bf16 %v809
        %v833 = vunpack.c.l.bf16 %v810
        %v834 = vunpack.c.h.bf16 %v810
        %v835 = vunpack.c.l.bf16 %v811
        %v836 = vunpack.c.h.bf16 %v811
        %v837 = vunpack.c.l.bf16 %v812
        %v838 = vunpack.c.h.bf16 %v812
        %v839 = vunpack.c.l.bf16 %v813
        %v840 = vunpack.c.h.bf16 %v813
        %v841 = vunpack.c.l.bf16 %v814
        %v842 = vunpack.c.h.bf16 %v814
        %v843 = vunpack.c.l.bf16 %v815
        %v844 = vunpack.c.h.bf16 %v815
        %v845 = vunpack.c.l.bf16 %v816
        %v846 = vunpack.c.h.bf16 %v816
        %v847 = vunpack.c.l.bf16 %v817
        %v848 = vunpack.c.h.bf16 %v817
        %v849 = vunpack.c.l.bf16 %v818
        %v850 = vunpack.c.h.bf16 %v818
        %vm851 = vcmp.gt.f32.partialorder %v819, %v721
        %vm852 = vcmp.gt.f32.partialorder %v820, %v722
        %vm853 = vcmp.gt.f32.partialorder %v821, %v723
        %vm854 = vcmp.gt.f32.partialorder %v822, %v724
        %vm855 = vcmp.gt.f32.partialorder %v823, %v725
        %vm856 = vcmp.gt.f32.partialorder %v824, %v726
        %vm857 = vcmp.gt.f32.partialorder %v825, %v727
        %vm858 = vcmp.gt.f32.partialorder %v826, %v728
        %vm859 = vcmp.gt.f32.partialorder %v827, %v729
        %vm860 = vcmp.gt.f32.partialorder %v828, %v730
        %vm861 = vcmp.gt.f32.partialorder %v829, %v731
        %vm862 = vcmp.gt.f32.partialorder %v830, %v732
        %vm863 = vcmp.gt.f32.partialorder %v831, %v733
        %vm864 = vcmp.gt.f32.partialorder %v832, %v734
        %vm865 = vcmp.gt.f32.partialorder %v833, %v735
        %vm866 = vcmp.gt.f32.partialorder %v834, %v736
        %vm867 = vcmp.gt.f32.partialorder %v835, %v737
        %vm868 = vcmp.gt.f32.partialorder %v836, %v738
        %vm869 = vcmp.gt.f32.partialorder %v837, %v739
        %vm870 = vcmp.gt.f32.partialorder %v838, %v740
        %vm871 = vcmp.gt.f32.partialorder %v839, %v741
        %vm872 = vcmp.gt.f32.partialorder %v840, %v742
        %vm873 = vcmp.gt.f32.partialorder %v841, %v743
        %vm874 = vcmp.gt.f32.partialorder %v842, %v744
        %vm875 = vcmp.gt.f32.partialorder %v843, %v745
        %vm876 = vcmp.gt.f32.partialorder %v844, %v746
        %vm877 = vcmp.gt.f32.partialorder %v845, %v747
        %vm878 = vcmp.gt.f32.partialorder %v846, %v748
        %vm879 = vcmp.gt.f32.partialorder %v847, %v749
        %vm880 = vcmp.gt.f32.partialorder %v848, %v750
        %vm881 = vcmp.gt.f32.partialorder %v849, %v751
        %vm882 = vcmp.gt.f32.partialorder %v850, %v752
        %v883 = vsel %vm851, %v819, %v721
        %v884 = vsel %vm852, %v820, %v722
        %v885 = vsel %vm853, %v821, %v723
        %v886 = vsel %vm854, %v822, %v724
        %v887 = vsel %vm855, %v823, %v725
        %v888 = vsel %vm856, %v824, %v726
        %v889 = vsel %vm857, %v825, %v727
        %v890 = vsel %vm858, %v826, %v728
        %v891 = vsel %vm859, %v827, %v729
        %v892 = vsel %vm860, %v828, %v730
        %v893 = vsel %vm861, %v829, %v731
        %v894 = vsel %vm862, %v830, %v732
        %v895 = vsel %vm863, %v831, %v733
        %v896 = vsel %vm864, %v832, %v734
        %v897 = vsel %vm865, %v833, %v735
        %v898 = vsel %vm866, %v834, %v736
        %v899 = vsel %vm867, %v835, %v737
        %v900 = vsel %vm868, %v836, %v738
        %v901 = vsel %vm869, %v837, %v739
        %v902 = vsel %vm870, %v838, %v740
        %v903 = vsel %vm871, %v839, %v741
        %v904 = vsel %vm872, %v840, %v742
        %v905 = vsel %vm873, %v841, %v743
        %v906 = vsel %vm874, %v842, %v744
        %v907 = vsel %vm875, %v843, %v745
        %v908 = vsel %vm876, %v844, %v746
        %v909 = vsel %vm877, %v845, %v747
        %v910 = vsel %vm878, %v846, %v748
        %v911 = vsel %vm879, %v847, %v749
        %v912 = vsel %vm880, %v848, %v750
        %v913 = vsel %vm881, %v849, %v751
        %v914 = vsel %vm882, %v850, %v752
        %s915 = scalar_lea.vmem %s345, 384 [#allocation6]
        %v916 = vld [vmem:[%s915] sm:$0xff]
        %v917 = vld [vmem:[%s915 + $0x8] sm:$0xff]
        %v918 = vld [vmem:[%s915 + $0x10] sm:$0xff]
        %v919 = vld [vmem:[%s915 + $0x18] sm:$0xff]
        %v920 = vld [vmem:[%s915 + $0x20] sm:$0xff]
        %v921 = vld [vmem:[%s915 + $0x28] sm:$0xff]
        %v922 = vld [vmem:[%s915 + $0x30] sm:$0xff]
        %v923 = vld [vmem:[%s915 + $0x38] sm:$0xff]
        %v924 = vld [vmem:[%s915 + $0x40] sm:$0xff]
        %v925 = vld [vmem:[%s915 + $0x48] sm:$0xff]
        %v926 = vld [vmem:[%s915 + $0x50] sm:$0xff]
        %v927 = vld [vmem:[%s915 + $0x58] sm:$0xff]
        %v928 = vld [vmem:[%s915 + $0x60] sm:$0xff]
        %v929 = vld [vmem:[%s915 + $0x68] sm:$0xff]
        %v930 = vld [vmem:[%s915 + $0x70] sm:$0xff]
        %v931 = vld [vmem:[%s915 + $0x78] sm:$0xff]
        %vm932 = vmpackc.low %vm852, %vm851
        %vm933 = vmpackc.low %vm854, %vm853
        %vm934 = vmpackc.low %vm856, %vm855
        %vm935 = vmpackc.low %vm858, %vm857
        %vm936 = vmpackc.low %vm860, %vm859
        %vm937 = vmpackc.low %vm862, %vm861
        %vm938 = vmpackc.low %vm864, %vm863
        %vm939 = vmpackc.low %vm866, %vm865
        %vm940 = vmpackc.low %vm868, %vm867
        %vm941 = vmpackc.low %vm870, %vm869
        %vm942 = vmpackc.low %vm872, %vm871
        %vm943 = vmpackc.low %vm874, %vm873
        %vm944 = vmpackc.low %vm876, %vm875
        %vm945 = vmpackc.low %vm878, %vm877
        %vm946 = vmpackc.low %vm880, %vm879
        %vm947 = vmpackc.low %vm882, %vm881
        %v948 = vsel %vm932, %v916, %v786
        %v949 = vsel %vm933, %v917, %v787
        %v950 = vsel %vm934, %v918, %v788
        %v951 = vsel %vm935, %v919, %v789
        %v952 = vsel %vm936, %v920, %v790
        %v953 = vsel %vm937, %v921, %v791
        %v954 = vsel %vm938, %v922, %v792
        %v955 = vsel %vm939, %v923, %v793
        %v956 = vsel %vm940, %v924, %v794
        %v957 = vsel %vm941, %v925, %v795
        %v958 = vsel %vm942, %v926, %v796
        %v959 = vsel %vm943, %v927, %v797
        %v960 = vsel %vm944, %v928, %v798
        %v961 = vsel %vm945, %v929, %v799
        %v962 = vsel %vm946, %v930, %v800
        %v963 = vsel %vm947, %v931, %v801
        %s964 = scalar_lea.vmem %s355, 512 [#allocation8]
        %v965 = vld [vmem:[%s964] sm:$0xff]
        %v966 = vld [vmem:[%s964 + $0x8] sm:$0xff]
        %v967 = vld [vmem:[%s964 + $0x10] sm:$0xff]
        %v968 = vld [vmem:[%s964 + $0x18] sm:$0xff]
        %v969 = vld [vmem:[%s964 + $0x20] sm:$0xff]
        %v970 = vld [vmem:[%s964 + $0x28] sm:$0xff]
        %v971 = vld [vmem:[%s964 + $0x30] sm:$0xff]
        %v972 = vld [vmem:[%s964 + $0x38] sm:$0xff]
        %v973 = vld [vmem:[%s964 + $0x40] sm:$0xff]
        %v974 = vld [vmem:[%s964 + $0x48] sm:$0xff]
        %v975 = vld [vmem:[%s964 + $0x50] sm:$0xff]
        %v976 = vld [vmem:[%s964 + $0x58] sm:$0xff]
        %v977 = vld [vmem:[%s964 + $0x60] sm:$0xff]
        %v978 = vld [vmem:[%s964 + $0x68] sm:$0xff]
        %v979 = vld [vmem:[%s964 + $0x70] sm:$0xff]
        %v980 = vld [vmem:[%s964 + $0x78] sm:$0xff]
        %v981 = vunpack.c.l.bf16 %v965
        %v982 = vunpack.c.h.bf16 %v965
        %v983 = vunpack.c.l.bf16 %v966
        %v984 = vunpack.c.h.bf16 %v966
        %v985 = vunpack.c.l.bf16 %v967
        %v986 = vunpack.c.h.bf16 %v967
        %v987 = vunpack.c.l.bf16 %v968
        %v988 = vunpack.c.h.bf16 %v968
        %v989 = vunpack.c.l.bf16 %v969
        %v990 = vunpack.c.h.bf16 %v969
        %v991 = vunpack.c.l.bf16 %v970
        %v992 = vunpack.c.h.bf16 %v970
        %v993 = vunpack.c.l.bf16 %v971
        %v994 = vunpack.c.h.bf16 %v971
        %v995 = vunpack.c.l.bf16 %v972
        %v996 = vunpack.c.h.bf16 %v972
        %v997 = vunpack.c.l.bf16 %v973
        %v998 = vunpack.c.h.bf16 %v973
        %v999 = vunpack.c.l.bf16 %v974
        %v1000 = vunpack.c.h.bf16 %v974
        %v1001 = vunpack.c.l.bf16 %v975
        %v1002 = vunpack.c.h.bf16 %v975
        %v1003 = vunpack.c.l.bf16 %v976
        %v1004 = vunpack.c.h.bf16 %v976
        %v1005 = vunpack.c.l.bf16 %v977
        %v1006 = vunpack.c.h.bf16 %v977
        %v1007 = vunpack.c.l.bf16 %v978
        %v1008 = vunpack.c.h.bf16 %v978
        %v1009 = vunpack.c.l.bf16 %v979
        %v1010 = vunpack.c.h.bf16 %v979
        %v1011 = vunpack.c.l.bf16 %v980
        %v1012 = vunpack.c.h.bf16 %v980
        %vm1013 = vcmp.gt.f32.partialorder %v981, %v883
        %vm1014 = vcmp.gt.f32.partialorder %v982, %v884
        %vm1015 = vcmp.gt.f32.partialorder %v983, %v885
        %vm1016 = vcmp.gt.f32.partialorder %v984, %v886
        %vm1017 = vcmp.gt.f32.partialorder %v985, %v887
        %vm1018 = vcmp.gt.f32.partialorder %v986, %v888
        %vm1019 = vcmp.gt.f32.partialorder %v987, %v889
        %vm1020 = vcmp.gt.f32.partialorder %v988, %v890
        %vm1021 = vcmp.gt.f32.partialorder %v989, %v891
        %vm1022 = vcmp.gt.f32.partialorder %v990, %v892
        %vm1023 = vcmp.gt.f32.partialorder %v991, %v893
        %vm1024 = vcmp.gt.f32.partialorder %v992, %v894
        %vm1025 = vcmp.gt.f32.partialorder %v993, %v895
        %vm1026 = vcmp.gt.f32.partialorder %v994, %v896
        %vm1027 = vcmp.gt.f32.partialorder %v995, %v897
        %vm1028 = vcmp.gt.f32.partialorder %v996, %v898
        %vm1029 = vcmp.gt.f32.partialorder %v997, %v899
        %vm1030 = vcmp.gt.f32.partialorder %v998, %v900
        %vm1031 = vcmp.gt.f32.partialorder %v999, %v901
        %vm1032 = vcmp.gt.f32.partialorder %v1000, %v902
        %vm1033 = vcmp.gt.f32.partialorder %v1001, %v903
        %vm1034 = vcmp.gt.f32.partialorder %v1002, %v904
        %vm1035 = vcmp.gt.f32.partialorder %v1003, %v905
        %vm1036 = vcmp.gt.f32.partialorder %v1004, %v906
        %vm1037 = vcmp.gt.f32.partialorder %v1005, %v907
        %vm1038 = vcmp.gt.f32.partialorder %v1006, %v908
        %vm1039 = vcmp.gt.f32.partialorder %v1007, %v909
        %vm1040 = vcmp.gt.f32.partialorder %v1008, %v910
        %vm1041 = vcmp.gt.f32.partialorder %v1009, %v911
        %vm1042 = vcmp.gt.f32.partialorder %v1010, %v912
        %vm1043 = vcmp.gt.f32.partialorder %v1011, %v913
        %vm1044 = vcmp.gt.f32.partialorder %v1012, %v914
        %v1045 = vsel %vm1013, %v981, %v883
        %v1046 = vsel %vm1014, %v982, %v884
        %v1047 = vsel %vm1015, %v983, %v885
        %v1048 = vsel %vm1016, %v984, %v886
        %v1049 = vsel %vm1017, %v985, %v887
        %v1050 = vsel %vm1018, %v986, %v888
        %v1051 = vsel %vm1019, %v987, %v889
        %v1052 = vsel %vm1020, %v988, %v890
        %v1053 = vsel %vm1021, %v989, %v891
        %v1054 = vsel %vm1022, %v990, %v892
        %v1055 = vsel %vm1023, %v991, %v893
        %v1056 = vsel %vm1024, %v992, %v894
        %v1057 = vsel %vm1025, %v993, %v895
        %v1058 = vsel %vm1026, %v994, %v896
        %v1059 = vsel %vm1027, %v995, %v897
        %v1060 = vsel %vm1028, %v996, %v898
        %v1061 = vsel %vm1029, %v997, %v899
        %v1062 = vsel %vm1030, %v998, %v900
        %v1063 = vsel %vm1031, %v999, %v901
        %v1064 = vsel %vm1032, %v1000, %v902
        %v1065 = vsel %vm1033, %v1001, %v903
        %v1066 = vsel %vm1034, %v1002, %v904
        %v1067 = vsel %vm1035, %v1003, %v905
        %v1068 = vsel %vm1036, %v1004, %v906
        %v1069 = vsel %vm1037, %v1005, %v907
        %v1070 = vsel %vm1038, %v1006, %v908
        %v1071 = vsel %vm1039, %v1007, %v909
        %v1072 = vsel %vm1040, %v1008, %v910
        %v1073 = vsel %vm1041, %v1009, %v911
        %v1074 = vsel %vm1042, %v1010, %v912
        %v1075 = vsel %vm1043, %v1011, %v913
        %v1076 = vsel %vm1044, %v1012, %v914
        %s1077 = scalar_lea.vmem %s345, 512 [#allocation6]
        %v1078 = vld [vmem:[%s1077] sm:$0xff]
        %v1079 = vld [vmem:[%s1077 + $0x8] sm:$0xff]
        %v1080 = vld [vmem:[%s1077 + $0x10] sm:$0xff]
        %v1081 = vld [vmem:[%s1077 + $0x18] sm:$0xff]
        %v1082 = vld [vmem:[%s1077 + $0x20] sm:$0xff]
        %v1083 = vld [vmem:[%s1077 + $0x28] sm:$0xff]
        %v1084 = vld [vmem:[%s1077 + $0x30] sm:$0xff]
        %v1085 = vld [vmem:[%s1077 + $0x38] sm:$0xff]
        %v1086 = vld [vmem:[%s1077 + $0x40] sm:$0xff]
        %v1087 = vld [vmem:[%s1077 + $0x48] sm:$0xff]
        %v1088 = vld [vmem:[%s1077 + $0x50] sm:$0xff]
        %v1089 = vld [vmem:[%s1077 + $0x58] sm:$0xff]
        %v1090 = vld [vmem:[%s1077 + $0x60] sm:$0xff]
        %v1091 = vld [vmem:[%s1077 + $0x68] sm:$0xff]
        %v1092 = vld [vmem:[%s1077 + $0x70] sm:$0xff]
        %v1093 = vld [vmem:[%s1077 + $0x78] sm:$0xff]
        %vm1094 = vmpackc.low %vm1014, %vm1013
        %vm1095 = vmpackc.low %vm1016, %vm1015
        %vm1096 = vmpackc.low %vm1018, %vm1017
        %vm1097 = vmpackc.low %vm1020, %vm1019
        %vm1098 = vmpackc.low %vm1022, %vm1021
        %vm1099 = vmpackc.low %vm1024, %vm1023
        %vm1100 = vmpackc.low %vm1026, %vm1025
        %vm1101 = vmpackc.low %vm1028, %vm1027
        %vm1102 = vmpackc.low %vm1030, %vm1029
        %vm1103 = vmpackc.low %vm1032, %vm1031
        %vm1104 = vmpackc.low %vm1034, %vm1033
        %vm1105 = vmpackc.low %vm1036, %vm1035
        %vm1106 = vmpackc.low %vm1038, %vm1037
        %vm1107 = vmpackc.low %vm1040, %vm1039
        %vm1108 = vmpackc.low %vm1042, %vm1041
        %vm1109 = vmpackc.low %vm1044, %vm1043
        %v1110 = vsel %vm1094, %v1078, %v948
        %v1111 = vsel %vm1095, %v1079, %v949
        %v1112 = vsel %vm1096, %v1080, %v950
        %v1113 = vsel %vm1097, %v1081, %v951
        %v1114 = vsel %vm1098, %v1082, %v952
        %v1115 = vsel %vm1099, %v1083, %v953
        %v1116 = vsel %vm1100, %v1084, %v954
        %v1117 = vsel %vm1101, %v1085, %v955
        %v1118 = vsel %vm1102, %v1086, %v956
        %v1119 = vsel %vm1103, %v1087, %v957
        %v1120 = vsel %vm1104, %v1088, %v958
        %v1121 = vsel %vm1105, %v1089, %v959
        %v1122 = vsel %vm1106, %v1090, %v960
        %v1123 = vsel %vm1107, %v1091, %v961
        %v1124 = vsel %vm1108, %v1092, %v962
        %v1125 = vsel %vm1109, %v1093, %v963
        %s1126 = scalar_lea.vmem %s355, 640 [#allocation8]
        %v1127 = vld [vmem:[%s1126] sm:$0xff]
        %v1128 = vld [vmem:[%s1126 + $0x8] sm:$0xff]
        %v1129 = vld [vmem:[%s1126 + $0x10] sm:$0xff]
        %v1130 = vld [vmem:[%s1126 + $0x18] sm:$0xff]
        %v1131 = vld [vmem:[%s1126 + $0x20] sm:$0xff]
        %v1132 = vld [vmem:[%s1126 + $0x28] sm:$0xff]
        %v1133 = vld [vmem:[%s1126 + $0x30] sm:$0xff]
        %v1134 = vld [vmem:[%s1126 + $0x38] sm:$0xff]
        %v1135 = vld [vmem:[%s1126 + $0x40] sm:$0xff]
        %v1136 = vld [vmem:[%s1126 + $0x48] sm:$0xff]
        %v1137 = vld [vmem:[%s1126 + $0x50] sm:$0xff]
        %v1138 = vld [vmem:[%s1126 + $0x58] sm:$0xff]
        %v1139 = vld [vmem:[%s1126 + $0x60] sm:$0xff]
        %v1140 = vld [vmem:[%s1126 + $0x68] sm:$0xff]
        %v1141 = vld [vmem:[%s1126 + $0x70] sm:$0xff]
        %v1142 = vld [vmem:[%s1126 + $0x78] sm:$0xff]
        %v1143 = vunpack.c.l.bf16 %v1127
        %v1144 = vunpack.c.h.bf16 %v1127
        %v1145 = vunpack.c.l.bf16 %v1128
        %v1146 = vunpack.c.h.bf16 %v1128
        %v1147 = vunpack.c.l.bf16 %v1129
        %v1148 = vunpack.c.h.bf16 %v1129
        %v1149 = vunpack.c.l.bf16 %v1130
        %v1150 = vunpack.c.h.bf16 %v1130
        %v1151 = vunpack.c.l.bf16 %v1131
        %v1152 = vunpack.c.h.bf16 %v1131
        %v1153 = vunpack.c.l.bf16 %v1132
        %v1154 = vunpack.c.h.bf16 %v1132
        %v1155 = vunpack.c.l.bf16 %v1133
        %v1156 = vunpack.c.h.bf16 %v1133
        %v1157 = vunpack.c.l.bf16 %v1134
        %v1158 = vunpack.c.h.bf16 %v1134
        %v1159 = vunpack.c.l.bf16 %v1135
        %v1160 = vunpack.c.h.bf16 %v1135
        %v1161 = vunpack.c.l.bf16 %v1136
        %v1162 = vunpack.c.h.bf16 %v1136
        %v1163 = vunpack.c.l.bf16 %v1137
        %v1164 = vunpack.c.h.bf16 %v1137
        %v1165 = vunpack.c.l.bf16 %v1138
        %v1166 = vunpack.c.h.bf16 %v1138
        %v1167 = vunpack.c.l.bf16 %v1139
        %v1168 = vunpack.c.h.bf16 %v1139
        %v1169 = vunpack.c.l.bf16 %v1140
        %v1170 = vunpack.c.h.bf16 %v1140
        %v1171 = vunpack.c.l.bf16 %v1141
        %v1172 = vunpack.c.h.bf16 %v1141
        %v1173 = vunpack.c.l.bf16 %v1142
        %v1174 = vunpack.c.h.bf16 %v1142
        %vm1175 = vcmp.gt.f32.partialorder %v1143, %v1045
        %vm1176 = vcmp.gt.f32.partialorder %v1144, %v1046
        %vm1177 = vcmp.gt.f32.partialorder %v1145, %v1047
        %vm1178 = vcmp.gt.f32.partialorder %v1146, %v1048
        %vm1179 = vcmp.gt.f32.partialorder %v1147, %v1049
        %vm1180 = vcmp.gt.f32.partialorder %v1148, %v1050
        %vm1181 = vcmp.gt.f32.partialorder %v1149, %v1051
        %vm1182 = vcmp.gt.f32.partialorder %v1150, %v1052
        %vm1183 = vcmp.gt.f32.partialorder %v1151, %v1053
        %vm1184 = vcmp.gt.f32.partialorder %v1152, %v1054
        %vm1185 = vcmp.gt.f32.partialorder %v1153, %v1055
        %vm1186 = vcmp.gt.f32.partialorder %v1154, %v1056
        %vm1187 = vcmp.gt.f32.partialorder %v1155, %v1057
        %vm1188 = vcmp.gt.f32.partialorder %v1156, %v1058
        %vm1189 = vcmp.gt.f32.partialorder %v1157, %v1059
        %vm1190 = vcmp.gt.f32.partialorder %v1158, %v1060
        %vm1191 = vcmp.gt.f32.partialorder %v1159, %v1061
        %vm1192 = vcmp.gt.f32.partialorder %v1160, %v1062
        %vm1193 = vcmp.gt.f32.partialorder %v1161, %v1063
        %vm1194 = vcmp.gt.f32.partialorder %v1162, %v1064
        %vm1195 = vcmp.gt.f32.partialorder %v1163, %v1065
        %vm1196 = vcmp.gt.f32.partialorder %v1164, %v1066
        %vm1197 = vcmp.gt.f32.partialorder %v1165, %v1067
        %vm1198 = vcmp.gt.f32.partialorder %v1166, %v1068
        %vm1199 = vcmp.gt.f32.partialorder %v1167, %v1069
        %vm1200 = vcmp.gt.f32.partialorder %v1168, %v1070
        %vm1201 = vcmp.gt.f32.partialorder %v1169, %v1071
        %vm1202 = vcmp.gt.f32.partialorder %v1170, %v1072
        %vm1203 = vcmp.gt.f32.partialorder %v1171, %v1073
        %vm1204 = vcmp.gt.f32.partialorder %v1172, %v1074
        %vm1205 = vcmp.gt.f32.partialorder %v1173, %v1075
        %vm1206 = vcmp.gt.f32.partialorder %v1174, %v1076
        %v1207 = vsel %vm1175, %v1143, %v1045
        %v1208 = vsel %vm1176, %v1144, %v1046
        %v1209 = vsel %vm1177, %v1145, %v1047
        %v1210 = vsel %vm1178, %v1146, %v1048
        %v1211 = vsel %vm1179, %v1147, %v1049
        %v1212 = vsel %vm1180, %v1148, %v1050
        %v1213 = vsel %vm1181, %v1149, %v1051
        %v1214 = vsel %vm1182, %v1150, %v1052
        %v1215 = vsel %vm1183, %v1151, %v1053
        %v1216 = vsel %vm1184, %v1152, %v1054
        %v1217 = vsel %vm1185, %v1153, %v1055
        %v1218 = vsel %vm1186, %v1154, %v1056
        %v1219 = vsel %vm1187, %v1155, %v1057
        %v1220 = vsel %vm1188, %v1156, %v1058
        %v1221 = vsel %vm1189, %v1157, %v1059
        %v1222 = vsel %vm1190, %v1158, %v1060
        %v1223 = vsel %vm1191, %v1159, %v1061
        %v1224 = vsel %vm1192, %v1160, %v1062
        %v1225 = vsel %vm1193, %v1161, %v1063
        %v1226 = vsel %vm1194, %v1162, %v1064
        %v1227 = vsel %vm1195, %v1163, %v1065
        %v1228 = vsel %vm1196, %v1164, %v1066
        %v1229 = vsel %vm1197, %v1165, %v1067
        %v1230 = vsel %vm1198, %v1166, %v1068
        %v1231 = vsel %vm1199, %v1167, %v1069
        %v1232 = vsel %vm1200, %v1168, %v1070
        %v1233 = vsel %vm1201, %v1169, %v1071
        %v1234 = vsel %vm1202, %v1170, %v1072
        %v1235 = vsel %vm1203, %v1171, %v1073
        %v1236 = vsel %vm1204, %v1172, %v1074
        %v1237 = vsel %vm1205, %v1173, %v1075
        %v1238 = vsel %vm1206, %v1174, %v1076
        %s1239 = scalar_lea.vmem %s345, 640 [#allocation6]
        %v1240 = vld [vmem:[%s1239] sm:$0xff]
        %v1241 = vld [vmem:[%s1239 + $0x8] sm:$0xff]
        %v1242 = vld [vmem:[%s1239 + $0x10] sm:$0xff]
        %v1243 = vld [vmem:[%s1239 + $0x18] sm:$0xff]
        %v1244 = vld [vmem:[%s1239 + $0x20] sm:$0xff]
        %v1245 = vld [vmem:[%s1239 + $0x28] sm:$0xff]
        %v1246 = vld [vmem:[%s1239 + $0x30] sm:$0xff]
        %v1247 = vld [vmem:[%s1239 + $0x38] sm:$0xff]
        %v1248 = vld [vmem:[%s1239 + $0x40] sm:$0xff]
        %v1249 = vld [vmem:[%s1239 + $0x48] sm:$0xff]
        %v1250 = vld [vmem:[%s1239 + $0x50] sm:$0xff]
        %v1251 = vld [vmem:[%s1239 + $0x58] sm:$0xff]
        %v1252 = vld [vmem:[%s1239 + $0x60] sm:$0xff]
        %v1253 = vld [vmem:[%s1239 + $0x68] sm:$0xff]
        %v1254 = vld [vmem:[%s1239 + $0x70] sm:$0xff]
        %v1255 = vld [vmem:[%s1239 + $0x78] sm:$0xff]
        %vm1256 = vmpackc.low %vm1176, %vm1175
        %vm1257 = vmpackc.low %vm1178, %vm1177
        %vm1258 = vmpackc.low %vm1180, %vm1179
        %vm1259 = vmpackc.low %vm1182, %vm1181
        %vm1260 = vmpackc.low %vm1184, %vm1183
        %vm1261 = vmpackc.low %vm1186, %vm1185
        %vm1262 = vmpackc.low %vm1188, %vm1187
        %vm1263 = vmpackc.low %vm1190, %vm1189
        %vm1264 = vmpackc.low %vm1192, %vm1191
        %vm1265 = vmpackc.low %vm1194, %vm1193
        %vm1266 = vmpackc.low %vm1196, %vm1195
        %vm1267 = vmpackc.low %vm1198, %vm1197
        %vm1268 = vmpackc.low %vm1200, %vm1199
        %vm1269 = vmpackc.low %vm1202, %vm1201
        %vm1270 = vmpackc.low %vm1204, %vm1203
        %vm1271 = vmpackc.low %vm1206, %vm1205
        %v1272 = vsel %vm1256, %v1240, %v1110
        %v1273 = vsel %vm1257, %v1241, %v1111
        %v1274 = vsel %vm1258, %v1242, %v1112
        %v1275 = vsel %vm1259, %v1243, %v1113
        %v1276 = vsel %vm1260, %v1244, %v1114
        %v1277 = vsel %vm1261, %v1245, %v1115
        %v1278 = vsel %vm1262, %v1246, %v1116
        %v1279 = vsel %vm1263, %v1247, %v1117
        %v1280 = vsel %vm1264, %v1248, %v1118
        %v1281 = vsel %vm1265, %v1249, %v1119
        %v1282 = vsel %vm1266, %v1250, %v1120
        %v1283 = vsel %vm1267, %v1251, %v1121
        %v1284 = vsel %vm1268, %v1252, %v1122
        %v1285 = vsel %vm1269, %v1253, %v1123
        %v1286 = vsel %vm1270, %v1254, %v1124
        %v1287 = vsel %vm1271, %v1255, %v1125
        %s1288 = scalar_lea.vmem %s355, 768 [#allocation8]
        %v1289 = vld [vmem:[%s1288] sm:$0xff]
        %v1290 = vld [vmem:[%s1288 + $0x8] sm:$0xff]
        %v1291 = vld [vmem:[%s1288 + $0x10] sm:$0xff]
        %v1292 = vld [vmem:[%s1288 + $0x18] sm:$0xff]
        %v1293 = vld [vmem:[%s1288 + $0x20] sm:$0xff]
        %v1294 = vld [vmem:[%s1288 + $0x28] sm:$0xff]
        %v1295 = vld [vmem:[%s1288 + $0x30] sm:$0xff]
        %v1296 = vld [vmem:[%s1288 + $0x38] sm:$0xff]
        %v1297 = vld [vmem:[%s1288 + $0x40] sm:$0xff]
        %v1298 = vld [vmem:[%s1288 + $0x48] sm:$0xff]
        %v1299 = vld [vmem:[%s1288 + $0x50] sm:$0xff]
        %v1300 = vld [vmem:[%s1288 + $0x58] sm:$0xff]
        %v1301 = vld [vmem:[%s1288 + $0x60] sm:$0xff]
        %v1302 = vld [vmem:[%s1288 + $0x68] sm:$0xff]
        %v1303 = vld [vmem:[%s1288 + $0x70] sm:$0xff]
        %v1304 = vld [vmem:[%s1288 + $0x78] sm:$0xff]
        %v1305 = vunpack.c.l.bf16 %v1289
        %v1306 = vunpack.c.h.bf16 %v1289
        %v1307 = vunpack.c.l.bf16 %v1290
        %v1308 = vunpack.c.h.bf16 %v1290
        %v1309 = vunpack.c.l.bf16 %v1291
        %v1310 = vunpack.c.h.bf16 %v1291
        %v1311 = vunpack.c.l.bf16 %v1292
        %v1312 = vunpack.c.h.bf16 %v1292
        %v1313 = vunpack.c.l.bf16 %v1293
        %v1314 = vunpack.c.h.bf16 %v1293
        %v1315 = vunpack.c.l.bf16 %v1294
        %v1316 = vunpack.c.h.bf16 %v1294
        %v1317 = vunpack.c.l.bf16 %v1295
        %v1318 = vunpack.c.h.bf16 %v1295
        %v1319 = vunpack.c.l.bf16 %v1296
        %v1320 = vunpack.c.h.bf16 %v1296
        %v1321 = vunpack.c.l.bf16 %v1297
        %v1322 = vunpack.c.h.bf16 %v1297
        %v1323 = vunpack.c.l.bf16 %v1298
        %v1324 = vunpack.c.h.bf16 %v1298
        %v1325 = vunpack.c.l.bf16 %v1299
        %v1326 = vunpack.c.h.bf16 %v1299
        %v1327 = vunpack.c.l.bf16 %v1300
        %v1328 = vunpack.c.h.bf16 %v1300
        %v1329 = vunpack.c.l.bf16 %v1301
        %v1330 = vunpack.c.h.bf16 %v1301
        %v1331 = vunpack.c.l.bf16 %v1302
        %v1332 = vunpack.c.h.bf16 %v1302
        %v1333 = vunpack.c.l.bf16 %v1303
        %v1334 = vunpack.c.h.bf16 %v1303
        %v1335 = vunpack.c.l.bf16 %v1304
        %v1336 = vunpack.c.h.bf16 %v1304
        %vm1337 = vcmp.gt.f32.partialorder %v1305, %v1207
        %vm1338 = vcmp.gt.f32.partialorder %v1306, %v1208
        %vm1339 = vcmp.gt.f32.partialorder %v1307, %v1209
        %vm1340 = vcmp.gt.f32.partialorder %v1308, %v1210
        %vm1341 = vcmp.gt.f32.partialorder %v1309, %v1211
        %vm1342 = vcmp.gt.f32.partialorder %v1310, %v1212
        %vm1343 = vcmp.gt.f32.partialorder %v1311, %v1213
        %vm1344 = vcmp.gt.f32.partialorder %v1312, %v1214
        %vm1345 = vcmp.gt.f32.partialorder %v1313, %v1215
        %vm1346 = vcmp.gt.f32.partialorder %v1314, %v1216
        %vm1347 = vcmp.gt.f32.partialorder %v1315, %v1217
        %vm1348 = vcmp.gt.f32.partialorder %v1316, %v1218
        %vm1349 = vcmp.gt.f32.partialorder %v1317, %v1219
        %vm1350 = vcmp.gt.f32.partialorder %v1318, %v1220
        %vm1351 = vcmp.gt.f32.partialorder %v1319, %v1221
        %vm1352 = vcmp.gt.f32.partialorder %v1320, %v1222
        %vm1353 = vcmp.gt.f32.partialorder %v1321, %v1223
        %vm1354 = vcmp.gt.f32.partialorder %v1322, %v1224
        %vm1355 = vcmp.gt.f32.partialorder %v1323, %v1225
        %vm1356 = vcmp.gt.f32.partialorder %v1324, %v1226
        %vm1357 = vcmp.gt.f32.partialorder %v1325, %v1227
        %vm1358 = vcmp.gt.f32.partialorder %v1326, %v1228
        %vm1359 = vcmp.gt.f32.partialorder %v1327, %v1229
        %vm1360 = vcmp.gt.f32.partialorder %v1328, %v1230
        %vm1361 = vcmp.gt.f32.partialorder %v1329, %v1231
        %vm1362 = vcmp.gt.f32.partialorder %v1330, %v1232
        %vm1363 = vcmp.gt.f32.partialorder %v1331, %v1233
        %vm1364 = vcmp.gt.f32.partialorder %v1332, %v1234
        %vm1365 = vcmp.gt.f32.partialorder %v1333, %v1235
        %vm1366 = vcmp.gt.f32.partialorder %v1334, %v1236
        %vm1367 = vcmp.gt.f32.partialorder %v1335, %v1237
        %vm1368 = vcmp.gt.f32.partialorder %v1336, %v1238
        %v1369 = vsel %vm1337, %v1305, %v1207
        %v1370 = vsel %vm1338, %v1306, %v1208
        %v1371 = vsel %vm1339, %v1307, %v1209
        %v1372 = vsel %vm1340, %v1308, %v1210
        %v1373 = vsel %vm1341, %v1309, %v1211
        %v1374 = vsel %vm1342, %v1310, %v1212
        %v1375 = vsel %vm1343, %v1311, %v1213
        %v1376 = vsel %vm1344, %v1312, %v1214
        %v1377 = vsel %vm1345, %v1313, %v1215
        %v1378 = vsel %vm1346, %v1314, %v1216
        %v1379 = vsel %vm1347, %v1315, %v1217
        %v1380 = vsel %vm1348, %v1316, %v1218
        %v1381 = vsel %vm1349, %v1317, %v1219
        %v1382 = vsel %vm1350, %v1318, %v1220
        %v1383 = vsel %vm1351, %v1319, %v1221
        %v1384 = vsel %vm1352, %v1320, %v1222
        %v1385 = vsel %vm1353, %v1321, %v1223
        %v1386 = vsel %vm1354, %v1322, %v1224
        %v1387 = vsel %vm1355, %v1323, %v1225
        %v1388 = vsel %vm1356, %v1324, %v1226
        %v1389 = vsel %vm1357, %v1325, %v1227
        %v1390 = vsel %vm1358, %v1326, %v1228
        %v1391 = vsel %vm1359, %v1327, %v1229
        %v1392 = vsel %vm1360, %v1328, %v1230
        %v1393 = vsel %vm1361, %v1329, %v1231
        %v1394 = vsel %vm1362, %v1330, %v1232
        %v1395 = vsel %vm1363, %v1331, %v1233
        %v1396 = vsel %vm1364, %v1332, %v1234
        %v1397 = vsel %vm1365, %v1333, %v1235
        %v1398 = vsel %vm1366, %v1334, %v1236
        %v1399 = vsel %vm1367, %v1335, %v1237
        %v1400 = vsel %vm1368, %v1336, %v1238
        %s1401 = scalar_lea.vmem %s345, 768 [#allocation6]
        %v1402 = vld [vmem:[%s1401] sm:$0xff]
        %v1403 = vld [vmem:[%s1401 + $0x8] sm:$0xff]
        %v1404 = vld [vmem:[%s1401 + $0x10] sm:$0xff]
        %v1405 = vld [vmem:[%s1401 + $0x18] sm:$0xff]
        %v1406 = vld [vmem:[%s1401 + $0x20] sm:$0xff]
        %v1407 = vld [vmem:[%s1401 + $0x28] sm:$0xff]
        %v1408 = vld [vmem:[%s1401 + $0x30] sm:$0xff]
        %v1409 = vld [vmem:[%s1401 + $0x38] sm:$0xff]
        %v1410 = vld [vmem:[%s1401 + $0x40] sm:$0xff]
        %v1411 = vld [vmem:[%s1401 + $0x48] sm:$0xff]
        %v1412 = vld [vmem:[%s1401 + $0x50] sm:$0xff]
        %v1413 = vld [vmem:[%s1401 + $0x58] sm:$0xff]
        %v1414 = vld [vmem:[%s1401 + $0x60] sm:$0xff]
        %v1415 = vld [vmem:[%s1401 + $0x68] sm:$0xff]
        %v1416 = vld [vmem:[%s1401 + $0x70] sm:$0xff]
        %v1417 = vld [vmem:[%s1401 + $0x78] sm:$0xff]
        %vm1418 = vmpackc.low %vm1338, %vm1337
        %vm1419 = vmpackc.low %vm1340, %vm1339
        %vm1420 = vmpackc.low %vm1342, %vm1341
        %vm1421 = vmpackc.low %vm1344, %vm1343
        %vm1422 = vmpackc.low %vm1346, %vm1345
        %vm1423 = vmpackc.low %vm1348, %vm1347
        %vm1424 = vmpackc.low %vm1350, %vm1349
        %vm1425 = vmpackc.low %vm1352, %vm1351
        %vm1426 = vmpackc.low %vm1354, %vm1353
        %vm1427 = vmpackc.low %vm1356, %vm1355
        %vm1428 = vmpackc.low %vm1358, %vm1357
        %vm1429 = vmpackc.low %vm1360, %vm1359
        %vm1430 = vmpackc.low %vm1362, %vm1361
        %vm1431 = vmpackc.low %vm1364, %vm1363
        %vm1432 = vmpackc.low %vm1366, %vm1365
        %vm1433 = vmpackc.low %vm1368, %vm1367
        %v1434 = vsel %vm1418, %v1402, %v1272
        %v1435 = vsel %vm1419, %v1403, %v1273
        %v1436 = vsel %vm1420, %v1404, %v1274
        %v1437 = vsel %vm1421, %v1405, %v1275
        %v1438 = vsel %vm1422, %v1406, %v1276
        %v1439 = vsel %vm1423, %v1407, %v1277
        %v1440 = vsel %vm1424, %v1408, %v1278
        %v1441 = vsel %vm1425, %v1409, %v1279
        %v1442 = vsel %vm1426, %v1410, %v1280
        %v1443 = vsel %vm1427, %v1411, %v1281
        %v1444 = vsel %vm1428, %v1412, %v1282
        %v1445 = vsel %vm1429, %v1413, %v1283
        %v1446 = vsel %vm1430, %v1414, %v1284
        %v1447 = vsel %vm1431, %v1415, %v1285
        %v1448 = vsel %vm1432, %v1416, %v1286
        %v1449 = vsel %vm1433, %v1417, %v1287
        %s1450 = scalar_lea.vmem %s355, 896 [#allocation8]
        %v1451 = vld [vmem:[%s1450] sm:$0xff]
        %v1452 = vld [vmem:[%s1450 + $0x8] sm:$0xff]
        %v1453 = vld [vmem:[%s1450 + $0x10] sm:$0xff]
        %v1454 = vld [vmem:[%s1450 + $0x18] sm:$0xff]
        %v1455 = vld [vmem:[%s1450 + $0x20] sm:$0xff]
        %v1456 = vld [vmem:[%s1450 + $0x28] sm:$0xff]
        %v1457 = vld [vmem:[%s1450 + $0x30] sm:$0xff]
        %v1458 = vld [vmem:[%s1450 + $0x38] sm:$0xff]
        %v1459 = vld [vmem:[%s1450 + $0x40] sm:$0xff]
        %v1460 = vld [vmem:[%s1450 + $0x48] sm:$0xff]
        %v1461 = vld [vmem:[%s1450 + $0x50] sm:$0xff]
        %v1462 = vld [vmem:[%s1450 + $0x58] sm:$0xff]
        %v1463 = vld [vmem:[%s1450 + $0x60] sm:$0xff]
        %v1464 = vld [vmem:[%s1450 + $0x68] sm:$0xff]
        %v1465 = vld [vmem:[%s1450 + $0x70] sm:$0xff]
        %v1466 = vld [vmem:[%s1450 + $0x78] sm:$0xff]
        %v1467 = vunpack.c.l.bf16 %v1451
        %v1468 = vunpack.c.h.bf16 %v1451
        %v1469 = vunpack.c.l.bf16 %v1452
        %v1470 = vunpack.c.h.bf16 %v1452
        %v1471 = vunpack.c.l.bf16 %v1453
        %v1472 = vunpack.c.h.bf16 %v1453
        %v1473 = vunpack.c.l.bf16 %v1454
        %v1474 = vunpack.c.h.bf16 %v1454
        %v1475 = vunpack.c.l.bf16 %v1455
        %v1476 = vunpack.c.h.bf16 %v1455
        %v1477 = vunpack.c.l.bf16 %v1456
        %v1478 = vunpack.c.h.bf16 %v1456
        %v1479 = vunpack.c.l.bf16 %v1457
        %v1480 = vunpack.c.h.bf16 %v1457
        %v1481 = vunpack.c.l.bf16 %v1458
        %v1482 = vunpack.c.h.bf16 %v1458
        %v1483 = vunpack.c.l.bf16 %v1459
        %v1484 = vunpack.c.h.bf16 %v1459
        %v1485 = vunpack.c.l.bf16 %v1460
        %v1486 = vunpack.c.h.bf16 %v1460
        %v1487 = vunpack.c.l.bf16 %v1461
        %v1488 = vunpack.c.h.bf16 %v1461
        %v1489 = vunpack.c.l.bf16 %v1462
        %v1490 = vunpack.c.h.bf16 %v1462
        %v1491 = vunpack.c.l.bf16 %v1463
        %v1492 = vunpack.c.h.bf16 %v1463
        %v1493 = vunpack.c.l.bf16 %v1464
        %v1494 = vunpack.c.h.bf16 %v1464
        %v1495 = vunpack.c.l.bf16 %v1465
        %v1496 = vunpack.c.h.bf16 %v1465
        %v1497 = vunpack.c.l.bf16 %v1466
        %v1498 = vunpack.c.h.bf16 %v1466
        %vm1499 = vcmp.gt.f32.partialorder %v1467, %v1369
        %vm1500 = vcmp.gt.f32.partialorder %v1468, %v1370
        %vm1501 = vcmp.gt.f32.partialorder %v1469, %v1371
        %vm1502 = vcmp.gt.f32.partialorder %v1470, %v1372
        %vm1503 = vcmp.gt.f32.partialorder %v1471, %v1373
        %vm1504 = vcmp.gt.f32.partialorder %v1472, %v1374
        %vm1505 = vcmp.gt.f32.partialorder %v1473, %v1375
        %vm1506 = vcmp.gt.f32.partialorder %v1474, %v1376
        %vm1507 = vcmp.gt.f32.partialorder %v1475, %v1377
        %vm1508 = vcmp.gt.f32.partialorder %v1476, %v1378
        %vm1509 = vcmp.gt.f32.partialorder %v1477, %v1379
        %vm1510 = vcmp.gt.f32.partialorder %v1478, %v1380
        %vm1511 = vcmp.gt.f32.partialorder %v1479, %v1381
        %vm1512 = vcmp.gt.f32.partialorder %v1480, %v1382
        %vm1513 = vcmp.gt.f32.partialorder %v1481, %v1383
        %vm1514 = vcmp.gt.f32.partialorder %v1482, %v1384
        %vm1515 = vcmp.gt.f32.partialorder %v1483, %v1385
        %vm1516 = vcmp.gt.f32.partialorder %v1484, %v1386
        %vm1517 = vcmp.gt.f32.partialorder %v1485, %v1387
        %vm1518 = vcmp.gt.f32.partialorder %v1486, %v1388
        %vm1519 = vcmp.gt.f32.partialorder %v1487, %v1389
        %vm1520 = vcmp.gt.f32.partialorder %v1488, %v1390
        %vm1521 = vcmp.gt.f32.partialorder %v1489, %v1391
        %vm1522 = vcmp.gt.f32.partialorder %v1490, %v1392
        %vm1523 = vcmp.gt.f32.partialorder %v1491, %v1393
        %vm1524 = vcmp.gt.f32.partialorder %v1492, %v1394
        %vm1525 = vcmp.gt.f32.partialorder %v1493, %v1395
        %vm1526 = vcmp.gt.f32.partialorder %v1494, %v1396
        %vm1527 = vcmp.gt.f32.partialorder %v1495, %v1397
        %vm1528 = vcmp.gt.f32.partialorder %v1496, %v1398
        %vm1529 = vcmp.gt.f32.partialorder %v1497, %v1399
        %vm1530 = vcmp.gt.f32.partialorder %v1498, %v1400
        %s1531 = scalar_lea.vmem %s345, 896 [#allocation6]
        %v1532 = vld [vmem:[%s1531] sm:$0xff]
        %v1533 = vld [vmem:[%s1531 + $0x8] sm:$0xff]
        %v1534 = vld [vmem:[%s1531 + $0x10] sm:$0xff]
        %v1535 = vld [vmem:[%s1531 + $0x18] sm:$0xff]
        %v1536 = vld [vmem:[%s1531 + $0x20] sm:$0xff]
        %v1537 = vld [vmem:[%s1531 + $0x28] sm:$0xff]
        %v1538 = vld [vmem:[%s1531 + $0x30] sm:$0xff]
        %v1539 = vld [vmem:[%s1531 + $0x38] sm:$0xff]
        %v1540 = vld [vmem:[%s1531 + $0x40] sm:$0xff]
        %v1541 = vld [vmem:[%s1531 + $0x48] sm:$0xff]
        %v1542 = vld [vmem:[%s1531 + $0x50] sm:$0xff]
        %v1543 = vld [vmem:[%s1531 + $0x58] sm:$0xff]
        %v1544 = vld [vmem:[%s1531 + $0x60] sm:$0xff]
        %v1545 = vld [vmem:[%s1531 + $0x68] sm:$0xff]
        %v1546 = vld [vmem:[%s1531 + $0x70] sm:$0xff]
        %v1547 = vld [vmem:[%s1531 + $0x78] sm:$0xff]
        %vm1548 = vmpackc.low %vm1500, %vm1499
        %vm1549 = vmpackc.low %vm1502, %vm1501
        %vm1550 = vmpackc.low %vm1504, %vm1503
        %vm1551 = vmpackc.low %vm1506, %vm1505
        %vm1552 = vmpackc.low %vm1508, %vm1507
        %vm1553 = vmpackc.low %vm1510, %vm1509
        %vm1554 = vmpackc.low %vm1512, %vm1511
        %vm1555 = vmpackc.low %vm1514, %vm1513
        %vm1556 = vmpackc.low %vm1516, %vm1515
        %vm1557 = vmpackc.low %vm1518, %vm1517
        %vm1558 = vmpackc.low %vm1520, %vm1519
        %vm1559 = vmpackc.low %vm1522, %vm1521
        %vm1560 = vmpackc.low %vm1524, %vm1523
        %vm1561 = vmpackc.low %vm1526, %vm1525
        %vm1562 = vmpackc.low %vm1528, %vm1527
        %vm1563 = vmpackc.low %vm1530, %vm1529
        %v1564 = vsel %vm1548, %v1532, %v1434
        %v1565 = vsel %vm1549, %v1533, %v1435
        %v1566 = vsel %vm1550, %v1534, %v1436
        %v1567 = vsel %vm1551, %v1535, %v1437
        %v1568 = vsel %vm1552, %v1536, %v1438
        %v1569 = vsel %vm1553, %v1537, %v1439
        %v1570 = vsel %vm1554, %v1538, %v1440
        %v1571 = vsel %vm1555, %v1539, %v1441
        %v1572 = vsel %vm1556, %v1540, %v1442
        %v1573 = vsel %vm1557, %v1541, %v1443
        %v1574 = vsel %vm1558, %v1542, %v1444
        %v1575 = vsel %vm1559, %v1543, %v1445
        %v1576 = vsel %vm1560, %v1544, %v1446
        %v1577 = vsel %vm1561, %v1545, %v1447
        %v1578 = vsel %vm1562, %v1546, %v1448
        %v1579 = vsel %vm1563, %v1547, %v1449
        %v1580 = vld [vmem:[#allocation2] sm:$0xff]
        %v1581 = vld [vmem:[%s335] sm:$0xff]
        %v1582 = vld [vmem:[%s335 + $0x8] sm:$0xff]
        %v1583 = vpack.c.bf16 %v1581, %v1581
        %v1584 = vpack.c.bf16 %v1582, %v1582
        %v1601 = vunpack.c.l.b16 %v1564
        %v1602 = vunpack.c.h.b16 %v1564
        %v1603 = vunpack.c.l.b16 %v1565
        %v1604 = vunpack.c.h.b16 %v1565
        %v1605 = vunpack.c.l.b16 %v1566
        %v1606 = vunpack.c.h.b16 %v1566
        %v1607 = vunpack.c.l.b16 %v1567
        %v1608 = vunpack.c.h.b16 %v1567
        %v1609 = vunpack.c.l.b16 %v1568
        %v1610 = vunpack.c.h.b16 %v1568
        %v1611 = vunpack.c.l.b16 %v1569
        %v1612 = vunpack.c.h.b16 %v1569
        %v1613 = vunpack.c.l.b16 %v1570
        %v1614 = vunpack.c.h.b16 %v1570
        %v1615 = vunpack.c.l.b16 %v1571
        %v1616 = vunpack.c.h.b16 %v1571
        %v1617 = vunpack.c.l.b16 %v1572
        %v1618 = vunpack.c.h.b16 %v1572
        %v1619 = vunpack.c.l.b16 %v1573
        %v1620 = vunpack.c.h.b16 %v1573
        %v1621 = vunpack.c.l.b16 %v1574
        %v1622 = vunpack.c.h.b16 %v1574
        %v1623 = vunpack.c.l.b16 %v1575
        %v1624 = vunpack.c.h.b16 %v1575
        %v1625 = vunpack.c.l.b16 %v1576
        %v1626 = vunpack.c.h.b16 %v1576
        %v1627 = vunpack.c.l.b16 %v1577
        %v1628 = vunpack.c.h.b16 %v1577
        %v1629 = vunpack.c.l.b16 %v1578
        %v1630 = vunpack.c.h.b16 %v1578
        %v1631 = vunpack.c.l.b16 %v1579
        %v1632 = vunpack.c.h.b16 %v1579
        %v1633 = vpack.c.b16 %v1603, %v1601
        %v1634 = vpack.c.b16 %v1604, %v1602
        %v1635 = vpack.c.b16 %v1607, %v1605
        %v1636 = vpack.c.b16 %v1608, %v1606
        %v1637 = vpack.c.b16 %v1611, %v1609
        %v1638 = vpack.c.b16 %v1612, %v1610
        %v1639 = vpack.c.b16 %v1615, %v1613
        %v1640 = vpack.c.b16 %v1616, %v1614
        %v1641 = vpack.c.b16 %v1619, %v1617
        %v1642 = vpack.c.b16 %v1620, %v1618
        %v1643 = vpack.c.b16 %v1623, %v1621
        %v1644 = vpack.c.b16 %v1624, %v1622
        %v1645 = vpack.c.b16 %v1627, %v1625
        %v1646 = vpack.c.b16 %v1628, %v1626
        %v1647 = vpack.c.b16 %v1631, %v1629
        %v1648 = vpack.c.b16 %v1632, %v1630
        %1665 = vmatpush.bf16.xpose.msra.mxu0 %v1647
        %1666 = vmatpush.bf16.xpose.msra.mxu0 %v1645
        %1667 = vmatpush.bf16.xpose.msra.mxu0 %v1643
        %1668 = vmatpush.bf16.xpose.msra.mxu0 %v1641
        %1669 = vmatpush.bf16.xpose.msra.mxu0 %v1639
        %1670 = vmatpush.bf16.xpose.msra.mxu0 %v1637
        %1671 = vmatpush.bf16.xpose.msra.mxu0 %v1635
        %1672 = vmatpush.bf16.xpose.msra.mxu0 %v1633
        %1673 = vmatmul.bf16.gmra.mxu0 %v1583
        %v1674 = vpop.f32.mrf.mxu0
        %v1675 = vadd.f32 0.0, %v1674
        %v1676 = vpop.f32.mrf.mxu0
        %1677 = vdwg.mxu0
        %1678 = vmatpush.bf16.xpose.msra.mxu0 %v1648
        %1679 = vmatpush.bf16.xpose.msra.mxu0 %v1646
        %1680 = vmatpush.bf16.xpose.msra.mxu0 %v1644
        %1681 = vmatpush.bf16.xpose.msra.mxu0 %v1642
        %1682 = vmatpush.bf16.xpose.msra.mxu0 %v1640
        %1683 = vmatpush.bf16.xpose.msra.mxu0 %v1638
        %1684 = vmatpush.bf16.xpose.msra.mxu0 %v1636
        %1685 = vmatpush.bf16.xpose.msra.mxu0 %v1634
        %1686 = vmatmul.bf16.gmra.mxu0 %v1584
        %v1687 = vpop.f32.mrf.mxu0
        %v1688 = vadd.f32 %v1675, %v1687
        %v1689 = vpop.f32.mrf.mxu0
        %1690 = vdwg.mxu0
        %v1691 = vadd.f32 %v1580, %v1688
        %1692 = vst [vmem:[#allocation2] sm:$0xff] %v1691
        %p1693 = scmp.eq.s32.totalorder %s32, 1
        // Predicated region
        $region57: #{tpu_custom_call.1} parent=35 // pred_check
          %p1694 = pneg %p1693
        $region58: #{tpu_custom_call.1} parent=35 // pred_check_branch
          %1696 = sbr.rel (%p1694) target = $region60
        $region59: #{tpu_custom_call.1} parent=35 // pred_region
          %v1697 = vld [vmem:[#allocation2] sm:$0xff]
          %v1698 = vld [vmem:[%s364] sm:$0x1]
          %v1700 = vperm.slane %v1698, 0
          %v1702 = vadd.f32 %v1697, %v1700
          %1703 = vst [vmem:[%s403] sm:$0xff] %v1702
        $region60: #{tpu_custom_call.1} parent=35 // pred_fallthru
          _
        %s1704 = sand.u32 %s155, 1
        %s1705 = scalar_lea.sflag [#allocation5], %s1704
        %s1706 = sand.u32 %s155, 1
        %s1707 = smul.addr %s1706, 8
        %s1708 = scalar_lea.vmem [#allocation11], %s1707
        // Predicated region
        $region61: #{tpu_custom_call.1} parent=35 // pred_check
          %p1709 = pneg %p165
        $region62: #{tpu_custom_call.1} parent=35 // pred_check_branch
          %1711 = sbr.rel (%p1709) target = $region64
        $region63: #{tpu_custom_call.1} parent=35 // pred_region
          %1713 = vsyncadd %s1705, 0
          %s1714 = smul.addr %s31, 8
          %s1715 = scalar_lea.hbm %s4, %s1714
          %s1717 = sshll.u32 %s1708, 4
          %s1718 = int_to_ptr.vmem [resolvable:$true] %s1717
          %s1719 = sshll.u32 %s1715, 4
          %s1720 = int_to_ptr.hbm [resolvable:$true] %s1719
          %1722 = dma.vmem_to_hbm [thread:$0]  %s1718, 128, %s1720, %s1705
        $region64: #{tpu_custom_call.1} parent=35 // pred_fallthru
          _
      $region36: #{tpu_custom_call.1} parent=5 // pred_fallthru
        _
      %p1723 = scmp.le.s32.totalorder 2, %s22
      // Predicated region
      $region65: #{tpu_custom_call.1} parent=5 // pred_check
        %p1724 = pneg %p1723
      $region66: #{tpu_custom_call.1} parent=5 // pred_check_branch
        %1726 = sbr.rel (%p1724) target = $region68
      $region67: #{tpu_custom_call.1} parent=5 // pred_region
        %s1727 = ssub.s32 %s22, 2
        // Predicated region
        $region69: #{tpu_custom_call.1} parent=67 // pred_check
          %p1728 = pneg %p171
        $region70: #{tpu_custom_call.1} parent=67 // pred_check_branch
          %1730 = sbr.rel (%p1728) target = $region72
        $region71: #{tpu_custom_call.1} parent=67 // pred_region
          %s1731 = sand.u32 %s156, 1
          %s1732 = scalar_lea.sflag [#allocation5], %s1731
          %s1733 = sand.u32 %s156, 1
          %s1734 = smul.addr %s1733, 8
          %s1735 = scalar_lea.vmem [#allocation11], %s1734
          %1737 = dma.done %s1732, 128
        $region72: #{tpu_custom_call.1} parent=67 // pred_fallthru
          _
      $region68: #{tpu_custom_call.1} parent=5 // pred_fallthru
        _
    $region6: #{tpu_custom_call.1} parent=1 // loop_footer
      %s26 = sadd.s32 1, %s22
    $region7: #{tpu_custom_call.1} parent=1 // loop_footer_branch
      %21 = sbr.rel target = $region3
    $region8: #{tpu_custom_call.1} parent=1 // loop_exit
      _
    %1738 = vsyncpa [#allocation4], 1
    %s1739 = scalar_lea.sflag [#allocation4], 1
    %1740 = vsyncpa %s1739, 1
    %1741 = vsyncpa [#allocation7], 1
    %s1742 = scalar_lea.sflag [#allocation7], 1
    %1743 = vsyncpa %s1742, 1
    %1744 = vsyncpa [#allocation10], 1
    %s1745 = scalar_lea.sflag [#allocation10], 1
    %1746 = vsyncpa %s1745, 1
    %1747 = vsyncpa [#allocation5], 1
    %s1748 = scalar_lea.sflag [#allocation5], 1
    %1749 = vsyncpa %s1748, 1

</llo_original>
